<compile_context>
chip_gen: v7x
topology: tpu7x:2x2x1
jax: 0.10.0
libtpu: 0.0.40
codegen_flags: <defaults>
</compile_context>

<pallas_src>
import functools

import jax
import jax.numpy as jnp
from jax.experimental import pallas as pl
from jax.experimental.pallas import tpu as pltpu

NEG_SLOPE = 0.01   # torch.nn.LeakyReLU default
BN_EPS = 1e-5      # torch.nn.BatchNorm1d default
H = 512            # hidden width
OUT_RAW = 100      # real output width
OUT_PAD = 128      # lane-padded output width


# --------------------------------------------------------------------------- #
# Kernel: one batch tile of the full (BN-folded) encoder MLP, fused in VMEM.  #
# --------------------------------------------------------------------------- #
def _encoder_kernel(x_ref,
                    w1_ref, b1_ref,
                    w2_ref, b2_ref,
                    w3_ref, b3_ref,
                    o_ref):
    # f32 load from HBM tile, cast to bf16 in-kernel (VPU) for the MXU.
    x = x_ref[...].astype(jnp.bfloat16)                               # (TB, num)

    # Linear(num,512) [+ folded BN] + LeakyReLU   (Dropout = identity in eval)
    h = jnp.dot(x, w1_ref[...], preferred_element_type=jnp.float32) + b1_ref[...]
    h = jnp.maximum(h, NEG_SLOPE * h)

    # Linear(512,512) [+ folded BN] + LeakyReLU
    h = jnp.dot(h.astype(jnp.bfloat16), w2_ref[...],
                preferred_element_type=jnp.float32) + b2_ref[...]
    h = jnp.maximum(h, NEG_SLOPE * h)

    # Linear(512,100) (zero-padded to 128 output lanes, lane-dense store)
    o_ref[...] = jnp.dot(h.astype(jnp.bfloat16), w3_ref[...],
                         preferred_element_type=jnp.float32) + b3_ref[...]


def _full_spec(shape):
    # Weight/bias fully resident per grid step (block == array, constant index).
    return pl.BlockSpec(shape, lambda i: (0,) * len(shape))


@functools.partial(jax.jit, static_argnames=("tile_b",))
def _encoder_pallas(x, params, tile_b):
    b, num = x.shape
    w1, b1, w2, b2, w3, b3 = params
    grid = (pl.cdiv(b, tile_b),)   # ragged last tile handled by Pallas masking
    return pl.pallas_call(
        _encoder_kernel,
        out_shape=jax.ShapeDtypeStruct((b, OUT_PAD), jnp.float32),
        grid_spec=pltpu.PrefetchScalarGridSpec(
            num_scalar_prefetch=0,
            grid=grid,
            in_specs=[
                pl.BlockSpec((tile_b, num), lambda i: (i, 0)),      # x tile (f32)
                _full_spec((num, H)), _full_spec((1, H)),           # W1', bias1'
                _full_spec((H, H)), _full_spec((1, H)),             # W2', bias2'
                _full_spec((H, OUT_PAD)), _full_spec((1, OUT_PAD)), # W3 (pad), b3
            ],
            out_specs=pl.BlockSpec((tile_b, OUT_PAD), lambda i: (i, 0)),
        ),
        compiler_params=pltpu.CompilerParams(
            dimension_semantics=("parallel",),
            vmem_limit_bytes=32 * 1024 * 1024),
    )(x, w1, b1, w2, b2, w3, b3)


# --------------------------------------------------------------------------- #
# Wrappers                                                                    #
# --------------------------------------------------------------------------- #
def _pick_tile_b(batch):
    """Static batch-tile buckets: one compiled variant per bucket (no per-batch
    recompile of the tile shape), big tiles at scale, and >= 2 grid steps for
    mid/large batches so v7x's two TensorCores both get work."""
    if batch <= 16:
        return 8
    if batch <= 256:
        return 128
    if batch <= 4096:
        return 256
    return 512


def encoder_forward(x, params):
    """Runs encoder1 on x of shape (B, num). Returns (B, 100) f32."""
    batch = x.shape[0]
    if batch == 0:
        return jnp.zeros((0, OUT_RAW), jnp.float32)
    tile_b = _pick_tile_b(batch)
    out = _encoder_pallas(x.astype(jnp.float32), params, tile_b)
    return out[:, :OUT_RAW]


def semi_encoding_multiple_forward(input1, input2, params):
    """Matches Semi_encoding_multiple.forward: (encoder1(input1), encoder1(input2)).

    Both inputs are fused into a single pallas_call (concatenated on batch)."""
    b1 = input1.shape[0]
    x = jnp.concatenate([input1, input2], axis=0)
    out = encoder_forward(x, params)
    return out[:b1], out[b1:]


# --------------------------------------------------------------------------- #
# Parameter construction (raw torch-like params) + BN folding / padding       #
# --------------------------------------------------------------------------- #
def init_raw_params(key, num):
    """Deterministic synthetic parameters matching the module's encoder1 shapes.

    Weights are stored transposed vs torch, i.e. (in, out)."""
    ks = jax.random.split(key, 16)

    def linear(kw, kb, n_in, n_out):
        bound = 1.0 / jnp.sqrt(jnp.float32(n_in))
        w = jax.random.uniform(kw, (n_in, n_out), jnp.float32, -bound, bound)
        b = jax.random.uniform(kb, (1, n_out), jnp.float32, -bound, bound)
        return w, b

    def batchnorm(kg, kb, km, kv, n):
        gamma = 1.0 + 0.1 * jax.random.normal(kg, (1, n), jnp.float32)
        beta = 0.1 * jax.random.normal(kb, (1, n), jnp.float32)
        rmean = 0.1 * jax.random.normal(km, (1, n), jnp.float32)
        rvar = jnp.abs(1.0 + 0.1 * jax.random.normal(kv, (1, n), jnp.float32))
        return gamma, beta, rmean, rvar

    w1, b1 = linear(ks[0], ks[1], num, H)
    g1, be1, m1, v1 = batchnorm(ks[2], ks[3], ks[4], ks[5], H)
    w2, b2 = linear(ks[6], ks[7], H, H)
    g2, be2, m2, v2 = batchnorm(ks[8], ks[9], ks[10], ks[11], H)
    w3, b3 = linear(ks[12], ks[13], H, OUT_RAW)
    return (w1, b1, g1, be1, m1, v1, w2, b2, g2, be2, m2, v2, w3, b3)


def fold_params(raw):
    """Fold eval-mode BatchNorm into the Linear weights (in f32), pad the final
    output width to 128 lanes, and cast weights to bf16 (biases stay f32)."""
    (w1, b1, g1, be1, m1, v1,
     w2, b2, g2, be2, m2, v2,
     w3, b3) = raw

    s1 = g1 * jax.lax.rsqrt(v1 + BN_EPS)
    t1 = be1 - m1 * s1
    s2 = g2 * jax.lax.rsqrt(v2 + BN_EPS)
    t2 = be2 - m2 * s2

    w1f = w1 * s1                      # (num, 512)
    b1f = b1 * s1 + t1                 # (1, 512)
    w2f = w2 * s2                      # (512, 512)
    b2f = b2 * s2 + t2                 # (1, 512)

    w3p = jnp.zeros((H, OUT_PAD), jnp.float32).at[:, :OUT_RAW].set(w3)
    b3p = jnp.zeros((1, OUT_PAD), jnp.float32).at[:, :OUT_RAW].set(b3)

    return (w1f.astype(jnp.bfloat16), b1f,
            w2f.astype(jnp.bfloat16), b2f,
            w3p.astype(jnp.bfloat16), b3p)


def _reference_forward(x, raw):
    """Pure-JAX f32 reference of encoder1 in eval mode."""
    (w1, b1, g1, be1, m1, v1,
     w2, b2, g2, be2, m2, v2,
     w3, b3) = raw
    h = x @ w1 + b1
    h = (h - m1) * jax.lax.rsqrt(v1 + BN_EPS) * g1 + be1
    h = jnp.where(h >= 0, h, NEG_SLOPE * h)
    h = h @ w2 + b2
    h = (h - m2) * jax.lax.rsqrt(v2 + BN_EPS) * g2 + be2
    h = jnp.where(h >= 0, h, NEG_SLOPE * h)
    return h @ w3 + b3


if __name__ == "__main__":
    num = 136   # typical combined-feature dimension for SemiBin
    B = 8       # small demo batch per input

    key = jax.random.PRNGKey(0)
    k_params, k_x1, k_x2 = jax.random.split(key, 3)

    raw_params = init_raw_params(k_params, num)
    params = fold_params(raw_params)

    input1 = jax.random.normal(k_x1, (B, num), jnp.float32)
    input2 = jax.random.normal(k_x2, (B, num), jnp.float32)

    out1, out2 = semi_encoding_multiple_forward(input1, input2, params)
    out1, out2 = jax.block_until_ready((out1, out2))

    assert out1.shape == (B, OUT_RAW) and out2.shape == (B, OUT_RAW)

    ref1 = _reference_forward(input1, raw_params)
    ref2 = _reference_forward(input2, raw_params)
    # bf16 matmuls with f32 accumulation -> relaxed tolerance vs f32 reference.
    assert jnp.allclose(out1, ref1, atol=2e-2, rtol=2e-2)
    assert jnp.allclose(out2, ref2, atol=2e-2, rtol=2e-2)

    print("KERNEL_OK")
</pallas_src>

<mosaic_0001>
module attributes {stable_mosaic.version = 11 : i64} {
  func.func @_encoder_kernel(%arg0: i32, %arg1: memref<8x136xf32, #tpu.memory_space<vmem>>, %arg2: memref<136x512xbf16, #tpu.memory_space<vmem>>, %arg3: memref<1x512xf32, #tpu.memory_space<vmem>>, %arg4: memref<512x512xbf16, #tpu.memory_space<vmem>>, %arg5: memref<1x512xf32, #tpu.memory_space<vmem>>, %arg6: memref<512x128xbf16, #tpu.memory_space<vmem>>, %arg7: memref<1x128xf32, #tpu.memory_space<vmem>>, %arg8: memref<8x128xf32, #tpu.memory_space<vmem>>) attributes {dimension_semantics = [#tpu.dimension_semantics<parallel>], iteration_bounds = array<i64: 2>, scalar_prefetch = 0 : i64, scratch_operands = 0 : i64, tpu.core_type = #tpu.core_type<tc>, window_params = [{transform_indices = @transform_0, window_bounds = array<i64: 8, 136>}, {pipeline_mode = #tpu.pipeline_mode<synchronous>, transform_indices = @transform_1, window_bounds = array<i64: 136, 512>}, {pipeline_mode = #tpu.pipeline_mode<synchronous>, transform_indices = @transform_2, window_bounds = array<i64: 1, 512>}, {pipeline_mode = #tpu.pipeline_mode<synchronous>, transform_indices = @transform_3, window_bounds = array<i64: 512, 512>}, {pipeline_mode = #tpu.pipeline_mode<synchronous>, transform_indices = @transform_4, window_bounds = array<i64: 1, 512>}, {pipeline_mode = #tpu.pipeline_mode<synchronous>, transform_indices = @transform_5, window_bounds = array<i64: 512, 128>}, {pipeline_mode = #tpu.pipeline_mode<synchronous>, transform_indices = @transform_6, window_bounds = array<i64: 1, 128>}, {transform_indices = @transform_7, window_bounds = array<i64: 8, 128>}]} {
    %c0 = arith.constant 0 : index
    %c0_0 = arith.constant 0 : index
    %0 = vector.load %arg1[%c0, %c0_0] : memref<8x136xf32, #tpu.memory_space<vmem>>, vector<8x136xf32>
    %1 = arith.truncf %0 : vector<8x136xf32> to vector<8x136xbf16>
    %c0_1 = arith.constant 0 : index
    %c0_2 = arith.constant 0 : index
    %2 = vector.load %arg2[%c0_1, %c0_2] : memref<136x512xbf16, #tpu.memory_space<vmem>>, vector<136x512xbf16>
    %cst = arith.constant dense<0.000000e+00> : vector<8x512xf32>
    %3 = tpu.matmul %1, %2, %cst {dimension_numbers = #tpu.dot_dimension_numbers<[1], [0], [0], [1], [0, 0, 1, 1], [], []>} : vector<8x136xbf16>, vector<136x512xbf16>, vector<8x512xf32> -> vector<8x512xf32>
    %c0_3 = arith.constant 0 : index
    %c0_4 = arith.constant 0 : index
    %4 = vector.load %arg3[%c0_3, %c0_4] : memref<1x512xf32, #tpu.memory_space<vmem>>, vector<1x512xf32>
    %5 = vector.broadcast %4 : vector<1x512xf32> to vector<8x512xf32>
    %6 = arith.addf %3, %5 : vector<8x512xf32>
    %cst_5 = arith.constant 0.00999999977 : f32
    %7 = vector.broadcast %cst_5 : f32 to vector<8x512xf32>
    %8 = arith.mulf %7, %6 : vector<8x512xf32>
    %9 = arith.maximumf %6, %8 : vector<8x512xf32>
    %10 = arith.truncf %9 : vector<8x512xf32> to vector<8x512xbf16>
    %c0_6 = arith.constant 0 : index
    %c0_7 = arith.constant 0 : index
    %11 = vector.load %arg4[%c0_6, %c0_7] : memref<512x512xbf16, #tpu.memory_space<vmem>>, vector<512x512xbf16>
    %cst_8 = arith.constant dense<0.000000e+00> : vector<8x512xf32>
    %12 = tpu.matmul %10, %11, %cst_8 {dimension_numbers = #tpu.dot_dimension_numbers<[1], [0], [0], [1], [0, 0, 1, 1], [], []>} : vector<8x512xbf16>, vector<512x512xbf16>, vector<8x512xf32> -> vector<8x512xf32>
    %c0_9 = arith.constant 0 : index
    %c0_10 = arith.constant 0 : index
    %13 = vector.load %arg5[%c0_9, %c0_10] : memref<1x512xf32, #tpu.memory_space<vmem>>, vector<1x512xf32>
    %14 = vector.broadcast %13 : vector<1x512xf32> to vector<8x512xf32>
    %15 = arith.addf %12, %14 : vector<8x512xf32>
    %cst_11 = arith.constant 0.00999999977 : f32
    %16 = vector.broadcast %cst_11 : f32 to vector<8x512xf32>
    %17 = arith.mulf %16, %15 : vector<8x512xf32>
    %18 = arith.maximumf %15, %17 : vector<8x512xf32>
    %19 = arith.truncf %18 : vector<8x512xf32> to vector<8x512xbf16>
    %c0_12 = arith.constant 0 : index
    %c0_13 = arith.constant 0 : index
    %20 = vector.load %arg6[%c0_12, %c0_13] : memref<512x128xbf16, #tpu.memory_space<vmem>>, vector<512x128xbf16>
    %cst_14 = arith.constant dense<0.000000e+00> : vector<8x128xf32>
    %21 = tpu.matmul %19, %20, %cst_14 {dimension_numbers = #tpu.dot_dimension_numbers<[1], [0], [0], [1], [0, 0, 1, 1], [], []>} : vector<8x512xbf16>, vector<512x128xbf16>, vector<8x128xf32> -> vector<8x128xf32>
    %c0_15 = arith.constant 0 : index
    %c0_16 = arith.constant 0 : index
    %22 = vector.load %arg7[%c0_15, %c0_16] : memref<1x128xf32, #tpu.memory_space<vmem>>, vector<1x128xf32>
    %23 = vector.broadcast %22 : vector<1x128xf32> to vector<8x128xf32>
    %24 = arith.addf %21, %23 : vector<8x128xf32>
    %c0_17 = arith.constant 0 : index
    %c0_18 = arith.constant 0 : index
    %25 = vector.load %arg8[%c0_17, %c0_18] : memref<8x128xf32, #tpu.memory_space<vmem>>, vector<8x128xf32>
    tpu.vector_store %arg8[%c0_17, %c0_18], %24 {strides = array<i32>} : memref<8x128xf32, #tpu.memory_space<vmem>>, vector<8x128xf32>,
    return
  }
  func.func @transform_0(%arg0: i32) -> (i32, i32) {
    %c0_i32 = arith.constant 0 : i32
    %c0_i32_0 = arith.constant 0 : i32
    return %arg0, %c0_i32 : i32, i32
  }
  func.func @transform_1(%arg0: i32) -> (i32, i32) {
    %c0_i32 = arith.constant 0 : i32
    %c0_i32_0 = arith.constant 0 : i32
    %c0_i32_1 = arith.constant 0 : i32
    return %c0_i32, %c0_i32_0 : i32, i32
  }
  func.func @transform_2(%arg0: i32) -> (i32, i32) {
    %c0_i32 = arith.constant 0 : i32
    %c0_i32_0 = arith.constant 0 : i32
    %c0_i32_1 = arith.constant 0 : i32
    return %c0_i32, %c0_i32_0 : i32, i32
  }
  func.func @transform_3(%arg0: i32) -> (i32, i32) {
    %c0_i32 = arith.constant 0 : i32
    %c0_i32_0 = arith.constant 0 : i32
    %c0_i32_1 = arith.constant 0 : i32
    return %c0_i32, %c0_i32_0 : i32, i32
  }
  func.func @transform_4(%arg0: i32) -> (i32, i32) {
    %c0_i32 = arith.constant 0 : i32
    %c0_i32_0 = arith.constant 0 : i32
    %c0_i32_1 = arith.constant 0 : i32
    return %c0_i32, %c0_i32_0 : i32, i32
  }
  func.func @transform_5(%arg0: i32) -> (i32, i32) {
    %c0_i32 = arith.constant 0 : i32
    %c0_i32_0 = arith.constant 0 : i32
    %c0_i32_1 = arith.constant 0 : i32
    return %c0_i32, %c0_i32_0 : i32, i32
  }
  func.func @transform_6(%arg0: i32) -> (i32, i32) {
    %c0_i32 = arith.constant 0 : i32
    %c0_i32_0 = arith.constant 0 : i32
    %c0_i32_1 = arith.constant 0 : i32
    return %c0_i32, %c0_i32_0 : i32, i32
  }
  func.func @transform_7(%arg0: i32) -> (i32, i32) {
    %c0_i32 = arith.constant 0 : i32
    %c0_i32_0 = arith.constant 0 : i32
    return %arg0, %c0_i32 : i32, i32
  }
}

</mosaic_0001>

<llo_original>
// kernel: _encoder_pallas.1
$region0: #{_encoder_pallas.1}
  #allocation0 [shape = 'u32[]', space=smem, size = 0x4, offset = 0x4, fixed_abs, tag = 'smem constant byte address 0x4 - core index']
  #allocation1 [shape = 'u32[144,128]{1,0:T(1,128)}', space=vmem, size = 0x12000, scoped, tag = 'internal scratch']
  %s0 = inlined_call_operand.hbm [shape: f32[16,136], index: 0, kind: input, shape index: {}]
  %s1 = inlined_call_operand.hbm [shape: bf16[136,512], index: 1, kind: input, shape index: {}]
  %s2 = inlined_call_operand.vmem [shape: f32[1,512], index: 2, kind: input, shape index: {}]
  %s3 = inlined_call_operand.hbm [shape: bf16[512,512], index: 3, kind: input, shape index: {}]
  %s4 = inlined_call_operand.vmem [shape: f32[1,512], index: 4, kind: input, shape index: {}]
  %s5 = inlined_call_operand.hbm [shape: bf16[512,128], index: 5, kind: input, shape index: {}]
  %s6 = inlined_call_operand.vmem [shape: f32[1,128], index: 6, kind: input, shape index: {}]
  %s7 = inlined_call_operand.hbm [shape: f32[16,128], index: 7, kind: output, shape index: {}]
  %s8 = sld [smem:[#allocation0]]
  $region77: #{_encoder_pallas.1} parent=0
    _
  %s10 = ssub.s32 1, %s8
  %s11 = scalar_select 0, %s10, %s8
  $region1: #{_encoder_pallas.1} parent=0
    #allocation2 [shape = 'u8[16384]{0}', space=vmem, size = 0x4000, scoped, tag = 'input window, operand 0']
    #allocation3 [shape = 's32[2]{0}', space=sflag, size = 0x8, scoped, tag = 'scoped memory for _encoder_pallas.1']
    #allocation4 [shape = 's32[2]{0}', space=sflag, size = 0x8, scoped, tag = 'scoped memory for _encoder_pallas.1']
    #allocation5 [shape = 'u8[139264]{0}', space=vmem, size = 0x22000, scoped, tag = 'input window, operand 1, single buffered']
    #allocation6 [shape = 's32[1]{0}', space=sflag, size = 0x4, scoped, tag = 'scoped memory for _encoder_pallas.1']
    #allocation7 [shape = 'u8[524288]{0}', space=vmem, size = 0x80000, scoped, tag = 'input window, operand 3, single buffered']
    #allocation8 [shape = 'u8[131072]{0}', space=vmem, size = 0x20000, scoped, tag = 'input window, operand 5, single buffered']
    #allocation9 [shape = 's32[1]{0}', space=sflag, size = 0x4, scoped, tag = 'scoped memory for _encoder_pallas.1']
    #allocation10 [shape = 'u8[8192]{0}', space=vmem, size = 0x2000, scoped, tag = 'output window, operand 0']
    %12 = vsyncpa [#allocation3], 0
    %s13 = scalar_lea.sflag [#allocation3], 1
    %14 = vsyncpa %s13, 0
    %15 = vsyncpa [#allocation6], 0
    %16 = vsyncpa [#allocation9], 0
    %17 = vsyncpa [#allocation4], 0
    %s18 = scalar_lea.sflag [#allocation4], 1
    %19 = vsyncpa %s18, 0
    loop: start=0, step=1, limit=4
    $region2: #{_encoder_pallas.1} parent=1 // loop_pre_header
      _
    $region3: #{_encoder_pallas.1} parent=1 // loop_header
      %s21 = sphi 0, %s25
      %p22 = scmp.ge.s32.totalorder %s21, 4
      %s31 = sphi 0, %s33
      %s34 = sphi 0, %s31
      %s35 = sphi 0, %s34
      %s51 = sphi 0, %s35
      %s55 = sphi 0, %s55
      %s57 = sphi 0, %s55
      %s58 = sphi 0, %s57
      %s72 = sphi 0, %s58
      %s76 = sphi 0, %s76
      %s78 = sphi 0, %s76
      %s79 = sphi 0, %s78
      %s93 = sphi 0, %s79
      %s97 = sphi 0, %s97
      %s99 = sphi 0, %s97
      %s100 = sphi 0, %s99
      %s114 = sphi 0, %s100
      %s118 = sphi 0, %s118
      %s120 = sphi 0, %s118
      %s121 = sphi 0, %s120
      %s135 = sphi 0, %s121
      %s139 = sphi 0, %s139
      %s141 = sphi 0, %s139
      %s142 = sphi 0, %s141
      %s156 = sphi 0, %s142
      %s160 = sphi 0, %s160
      %s162 = sphi 0, %s160
      %s163 = sphi 0, %s162
      %s177 = sphi 0, %s163
      %s183 = sphi 0, %s185
      %s186 = sphi 0, %s183
      %s187 = sphi 0, %s186
      %s203 = sphi 0, %s187
    $region4: #{_encoder_pallas.1} parent=1 // loop_header_branch
      %24 = sbr.rel (%p22) target = $region8
    $region5: #{_encoder_pallas.1} parent=1 // loop_body
      %s26 = ssub.s32 %s21, 1
      %s27 = ssub.s32 %s21, 2
      %s28 = sadd.s32 %s21, 1
      %s29 = ssub.s32 %s21, %s28
      %p30 = scmp.eq.s32.totalorder %s29, 0
      %s32 = sadd.s32 %s31, 1
      %s33 = scalar_select %p30, %s31, %s32
      %p36 = pneg %p30
      %p37 = scmp.eq.s32.totalorder %s21, 1
      %p38 = por %p36, %p37
      %p39 = scmp.ne.s32.totalorder %s31, %s34
      %p40 = scmp.eq.s32.totalorder %s21, 0
      %p41 = por %p39, %p40
      %p42 = scmp.ne.s32.totalorder %s31, %s34
      %p43 = scmp.eq.s32.totalorder %s26, 1
      %p44 = por %p42, %p43
      %p45 = scmp.ne.s32.totalorder %s34, %s35
      %p46 = scmp.eq.s32.totalorder %s26, 0
      %p47 = por %p45, %p46
      %p48 = scmp.ne.s32.totalorder %s34, %s35
      %p49 = scmp.eq.s32.totalorder %s27, 1
      %p50 = por %p48, %p49
      %p52 = scmp.ne.s32.totalorder %s35, %s51
      %p53 = scmp.eq.s32.totalorder %s27, 0
      %p54 = por %p52, %p53
      %s56 = sadd.s32 %s55, 1
      %p59 = scmp.eq.s32.totalorder %s21, 1
      %p60 = scmp.ne.s32.totalorder %s55, %s57
      %p61 = scmp.eq.s32.totalorder %s21, 0
      %p62 = por %p60, %p61
      %p63 = scmp.ne.s32.totalorder %s55, %s57
      %p64 = scmp.eq.s32.totalorder %s26, 1
      %p65 = por %p63, %p64
      %p66 = scmp.ne.s32.totalorder %s57, %s58
      %p67 = scmp.eq.s32.totalorder %s26, 0
      %p68 = por %p66, %p67
      %p69 = scmp.ne.s32.totalorder %s57, %s58
      %p70 = scmp.eq.s32.totalorder %s27, 1
      %p71 = por %p69, %p70
      %p73 = scmp.ne.s32.totalorder %s58, %s72
      %p74 = scmp.eq.s32.totalorder %s27, 0
      %p75 = por %p73, %p74
      %s77 = sadd.s32 %s76, 1
      %p80 = scmp.eq.s32.totalorder %s21, 1
      %p81 = scmp.ne.s32.totalorder %s76, %s78
      %p82 = scmp.eq.s32.totalorder %s21, 0
      %p83 = por %p81, %p82
      %p84 = scmp.ne.s32.totalorder %s76, %s78
      %p85 = scmp.eq.s32.totalorder %s26, 1
      %p86 = por %p84, %p85
      %p87 = scmp.ne.s32.totalorder %s78, %s79
      %p88 = scmp.eq.s32.totalorder %s26, 0
      %p89 = por %p87, %p88
      %p90 = scmp.ne.s32.totalorder %s78, %s79
      %p91 = scmp.eq.s32.totalorder %s27, 1
      %p92 = por %p90, %p91
      %p94 = scmp.ne.s32.totalorder %s79, %s93
      %p95 = scmp.eq.s32.totalorder %s27, 0
      %p96 = por %p94, %p95
      %s98 = sadd.s32 %s97, 1
      %p101 = scmp.eq.s32.totalorder %s21, 1
      %p102 = scmp.ne.s32.totalorder %s97, %s99
      %p103 = scmp.eq.s32.totalorder %s21, 0
      %p104 = por %p102, %p103
      %p105 = scmp.ne.s32.totalorder %s97, %s99
      %p106 = scmp.eq.s32.totalorder %s26, 1
      %p107 = por %p105, %p106
      %p108 = scmp.ne.s32.totalorder %s99, %s100
      %p109 = scmp.eq.s32.totalorder %s26, 0
      %p110 = por %p108, %p109
      %p111 = scmp.ne.s32.totalorder %s99, %s100
      %p112 = scmp.eq.s32.totalorder %s27, 1
      %p113 = por %p111, %p112
      %p115 = scmp.ne.s32.totalorder %s100, %s114
      %p116 = scmp.eq.s32.totalorder %s27, 0
      %p117 = por %p115, %p116
      %s119 = sadd.s32 %s118, 1
      %p122 = scmp.eq.s32.totalorder %s21, 1
      %p123 = scmp.ne.s32.totalorder %s118, %s120
      %p124 = scmp.eq.s32.totalorder %s21, 0
      %p125 = por %p123, %p124
      %p126 = scmp.ne.s32.totalorder %s118, %s120
      %p127 = scmp.eq.s32.totalorder %s26, 1
      %p128 = por %p126, %p127
      %p129 = scmp.ne.s32.totalorder %s120, %s121
      %p130 = scmp.eq.s32.totalorder %s26, 0
      %p131 = por %p129, %p130
      %p132 = scmp.ne.s32.totalorder %s120, %s121
      %p133 = scmp.eq.s32.totalorder %s27, 1
      %p134 = por %p132, %p133
      %p136 = scmp.ne.s32.totalorder %s121, %s135
      %p137 = scmp.eq.s32.totalorder %s27, 0
      %p138 = por %p136, %p137
      %s140 = sadd.s32 %s139, 1
      %p143 = scmp.eq.s32.totalorder %s21, 1
      %p144 = scmp.ne.s32.totalorder %s139, %s141
      %p145 = scmp.eq.s32.totalorder %s21, 0
      %p146 = por %p144, %p145
      %p147 = scmp.ne.s32.totalorder %s139, %s141
      %p148 = scmp.eq.s32.totalorder %s26, 1
      %p149 = por %p147, %p148
      %p150 = scmp.ne.s32.totalorder %s141, %s142
      %p151 = scmp.eq.s32.totalorder %s26, 0
      %p152 = por %p150, %p151
      %p153 = scmp.ne.s32.totalorder %s141, %s142
      %p154 = scmp.eq.s32.totalorder %s27, 1
      %p155 = por %p153, %p154
      %p157 = scmp.ne.s32.totalorder %s142, %s156
      %p158 = scmp.eq.s32.totalorder %s27, 0
      %p159 = por %p157, %p158
      %s161 = sadd.s32 %s160, 1
      %p164 = scmp.eq.s32.totalorder %s21, 1
      %p165 = scmp.ne.s32.totalorder %s160, %s162
      %p166 = scmp.eq.s32.totalorder %s21, 0
      %p167 = por %p165, %p166
      %p168 = scmp.ne.s32.totalorder %s160, %s162
      %p169 = scmp.eq.s32.totalorder %s26, 1
      %p170 = por %p168, %p169
      %p171 = scmp.ne.s32.totalorder %s162, %s163
      %p172 = scmp.eq.s32.totalorder %s26, 0
      %p173 = por %p171, %p172
      %p174 = scmp.ne.s32.totalorder %s162, %s163
      %p175 = scmp.eq.s32.totalorder %s27, 1
      %p176 = por %p174, %p175
      %p178 = scmp.ne.s32.totalorder %s163, %s177
      %p179 = scmp.eq.s32.totalorder %s27, 0
      %p180 = por %p178, %p179
      %s181 = ssub.s32 %s21, %s28
      %p182 = scmp.eq.s32.totalorder %s181, 0
      %s184 = sadd.s32 %s183, 1
      %s185 = scalar_select %p182, %s183, %s184
      %p188 = pneg %p182
      %p189 = scmp.eq.s32.totalorder %s21, 1
      %p190 = por %p188, %p189
      %p191 = scmp.ne.s32.totalorder %s183, %s186
      %p192 = scmp.eq.s32.totalorder %s21, 0
      %p193 = por %p191, %p192
      %p194 = scmp.ne.s32.totalorder %s183, %s186
      %p195 = scmp.eq.s32.totalorder %s26, 1
      %p196 = por %p194, %p195
      %p197 = scmp.ne.s32.totalorder %s186, %s187
      %p198 = scmp.eq.s32.totalorder %s26, 0
      %p199 = por %p197, %p198
      %p200 = scmp.ne.s32.totalorder %s186, %s187
      %p201 = scmp.eq.s32.totalorder %s27, 1
      %p202 = por %p200, %p201
      %p204 = scmp.ne.s32.totalorder %s187, %s203
      %p205 = scmp.eq.s32.totalorder %s27, 0
      %p206 = por %p204, %p205
      %p207 = scmp.le.s32.totalorder 1, %s21
      %p208 = scmp.lt.s32.totalorder %s21, 3
      %p209 = pnand %p207, %p208
      %p210 = pneg %p209
      // Predicated region
      $region9: #{_encoder_pallas.1} parent=5 // pred_check
        _
      $region10: #{_encoder_pallas.1} parent=5 // pred_check_branch
        %212 = sbr.rel (%p209) target = $region12
      $region11: #{_encoder_pallas.1} parent=5 // pred_region
        %s213 = ssub.s32 %s21, 1
        // Predicated region
        $region13: #{_encoder_pallas.1} parent=11 // pred_check
          %p214 = pneg %p68
        $region14: #{_encoder_pallas.1} parent=11 // pred_check_branch
          %216 = sbr.rel (%p214) target = $region16
        $region15: #{_encoder_pallas.1} parent=11 // pred_region
          %s218 = ssub.s32 4352, 4352
          %219 = vsyncadd [#allocation6], %s218
          %s220 = sshll.u32 [#allocation5], 4
          %s221 = int_to_ptr.vmem [resolvable:$true] %s220
          %226 = dma.hbm_to_vmem [thread:$0]  %s1, 4352, %s221, [#allocation6], 256, 256, 16
        $region16: #{_encoder_pallas.1} parent=11 // pred_fallthru
          _
        // Predicated region
        $region17: #{_encoder_pallas.1} parent=11 // pred_check
          %p227 = pneg %p89
        $region18: #{_encoder_pallas.1} parent=11 // pred_check_branch
          %229 = sbr.rel (%p227) target = $region20
        $region19: #{_encoder_pallas.1} parent=11 // pred_region
          _
        $region20: #{_encoder_pallas.1} parent=11 // pred_fallthru
          _
        // Predicated region
        $region21: #{_encoder_pallas.1} parent=11 // pred_check
          %p230 = pneg %p110
        $region22: #{_encoder_pallas.1} parent=11 // pred_check_branch
          %232 = sbr.rel (%p230) target = $region24
        $region23: #{_encoder_pallas.1} parent=11 // pred_region
          %s234 = ssub.s32 16384, 16384
          %235 = vsyncadd [#allocation6], %s234
          %s236 = sshll.u32 [#allocation7], 4
          %s237 = int_to_ptr.vmem [resolvable:$true] %s236
          %242 = dma.hbm_to_vmem [thread:$0]  %s3, 16384, %s237, [#allocation6], 256, 256, 16
        $region24: #{_encoder_pallas.1} parent=11 // pred_fallthru
          _
        // Predicated region
        $region25: #{_encoder_pallas.1} parent=11 // pred_check
          %p243 = pneg %p131
        $region26: #{_encoder_pallas.1} parent=11 // pred_check_branch
          %245 = sbr.rel (%p243) target = $region28
        $region27: #{_encoder_pallas.1} parent=11 // pred_region
          _
        $region28: #{_encoder_pallas.1} parent=11 // pred_fallthru
          _
        // Predicated region
        $region29: #{_encoder_pallas.1} parent=11 // pred_check
          %p246 = pneg %p152
        $region30: #{_encoder_pallas.1} parent=11 // pred_check_branch
          %248 = sbr.rel (%p246) target = $region32
        $region31: #{_encoder_pallas.1} parent=11 // pred_region
          %s250 = ssub.s32 4096, 4096
          %251 = vsyncadd [#allocation9], %s250
          %s252 = sshll.u32 [#allocation8], 4
          %s253 = int_to_ptr.vmem [resolvable:$true] %s252
          %258 = dma.hbm_to_vmem [thread:$0]  %s5, 4096, %s253, [#allocation9], 64, 64, 4
        $region32: #{_encoder_pallas.1} parent=11 // pred_fallthru
          _
        // Predicated region
        $region33: #{_encoder_pallas.1} parent=11 // pred_check
          %p259 = pneg %p173
        $region34: #{_encoder_pallas.1} parent=11 // pred_check_branch
          %261 = sbr.rel (%p259) target = $region36
        $region35: #{_encoder_pallas.1} parent=11 // pred_region
          _
        $region36: #{_encoder_pallas.1} parent=11 // pred_fallthru
          _
      $region12: #{_encoder_pallas.1} parent=5 // pred_fallthru
        _
      %p262 = scmp.lt.s32.totalorder %s21, 2
      // Predicated region
      $region37: #{_encoder_pallas.1} parent=5 // pred_check
        %p263 = pneg %p262
      $region38: #{_encoder_pallas.1} parent=5 // pred_check_branch
        %265 = sbr.rel (%p263) target = $region40
      $region39: #{_encoder_pallas.1} parent=5 // pred_region
        // Predicated region
        $region41: #{_encoder_pallas.1} parent=39 // pred_check
          %p266 = pneg %p41
        $region42: #{_encoder_pallas.1} parent=39 // pred_check_branch
          %268 = sbr.rel (%p266) target = $region44
        $region43: #{_encoder_pallas.1} parent=39 // pred_region
          %s269 = sand.u32 %s31, 1
          %s270 = scalar_lea.sflag [#allocation3], %s269
          %s271 = sand.u32 %s31, 1
          %s272 = smul.addr %s271, 16
          %s273 = scalar_lea.vmem [#allocation2], %s272
          %s275 = ssub.s32 256, 256
          %276 = vsyncadd %s270, %s275
          %s277 = smul.addr %s21, 2
          %s278 = smul.addr %s277, 128
          %s279 = scalar_lea.hbm %s0, %s278
          %s281 = sshll.u32 %s273, 4
          %s282 = int_to_ptr.vmem [resolvable:$true] %s281
          %284 = dma.hbm_to_vmem [thread:$0]  %s279, 256, %s282, %s270
        $region44: #{_encoder_pallas.1} parent=39 // pred_fallthru
          _
      $region40: #{_encoder_pallas.1} parent=5 // pred_fallthru
        _
      %p285 = scmp.le.s32.totalorder 1, %s21
      %p286 = scmp.lt.s32.totalorder %s21, 3
      %p287 = pnand %p285, %p286
      %p288 = pneg %p287
      // Predicated region
      $region45: #{_encoder_pallas.1} parent=5 // pred_check
        _
      $region46: #{_encoder_pallas.1} parent=5 // pred_check_branch
        %290 = sbr.rel (%p287) target = $region48
      $region47: #{_encoder_pallas.1} parent=5 // pred_region
        %s291 = ssub.s32 %s21, 1
        %s292 = sand.u32 %s34, 1
        %s293 = scalar_lea.sflag [#allocation3], %s292
        %s294 = sand.u32 %s34, 1
        %s295 = smul.addr %s294, 16
        %s296 = scalar_lea.vmem [#allocation2], %s295
        // Predicated region
        $region49: #{_encoder_pallas.1} parent=47 // pred_check
          %p297 = pneg %p47
        $region50: #{_encoder_pallas.1} parent=47 // pred_check_branch
          %299 = sbr.rel (%p297) target = $region52
        $region51: #{_encoder_pallas.1} parent=47 // pred_region
          %300 = dma.done %s293, 256
        $region52: #{_encoder_pallas.1} parent=47 // pred_fallthru
          _
        // Predicated region
        $region53: #{_encoder_pallas.1} parent=47 // pred_check
          %p301 = pneg %p68
        $region54: #{_encoder_pallas.1} parent=47 // pred_check_branch
          %303 = sbr.rel (%p301) target = $region56
        $region55: #{_encoder_pallas.1} parent=47 // pred_region
          %304 = dma.done [#allocation6], 4352
        $region56: #{_encoder_pallas.1} parent=47 // pred_fallthru
          _
        // Predicated region
        $region57: #{_encoder_pallas.1} parent=47 // pred_check
          %p305 = pneg %p110
        $region58: #{_encoder_pallas.1} parent=47 // pred_check_branch
          %307 = sbr.rel (%p305) target = $region60
        $region59: #{_encoder_pallas.1} parent=47 // pred_region
          %308 = dma.done [#allocation6], 16384
        $region60: #{_encoder_pallas.1} parent=47 // pred_fallthru
          _
        // Predicated region
        $region61: #{_encoder_pallas.1} parent=47 // pred_check
          %p309 = pneg %p152
        $region62: #{_encoder_pallas.1} parent=47 // pred_check_branch
          %311 = sbr.rel (%p309) target = $region64
        $region63: #{_encoder_pallas.1} parent=47 // pred_region
          %312 = dma.done [#allocation9], 4096
        $region64: #{_encoder_pallas.1} parent=47 // pred_fallthru
          _
        %s313 = sand.u32 %s34, 1
        %s314 = scalar_lea.sflag [#allocation3], %s313
        %s315 = sand.u32 %s34, 1
        %s316 = smul.addr %s315, 16
        %s317 = scalar_lea.vmem [#allocation2], %s316
        %p318 = pneg %p47
        %p319 = pneg %p44
        %p320 = pneg %p68
        %p321 = pneg %p65
        %p322 = pneg %p89
        %p323 = pneg %p86
        %p324 = pneg %p110
        %p325 = pneg %p107
        %p326 = pneg %p131
        %p327 = pneg %p128
        %p328 = pneg %p152
        %p329 = pneg %p149
        %p330 = pneg %p173
        %p331 = pneg %p170
        %p332 = pneg %p199
        %p333 = pneg %p196
        %s334 = sand.u32 %s186, 1
        %s335 = scalar_lea.sflag [#allocation4], %s334
        %s336 = sand.u32 %s186, 1
        %s337 = smul.addr %s336, 8
        %s338 = scalar_lea.vmem [#allocation10], %s337
        %v340 = vld [vmem:[%s296] sm:$0xff]
        %v341 = vld [vmem:[%s296 + $0x8] sm:$0xff]
        %v342 = vpack.c.bf16 %v340, %v340
        %v343 = vpack.c.bf16 %v341, %v341
        %v344 = vld [vmem:[#allocation5] sm:$0xff]
        %v345 = vld [vmem:[#allocation5 + $0x8] sm:$0xff]
        %v346 = vld [vmem:[#allocation5 + $0x10] sm:$0xff]
        %v347 = vld [vmem:[#allocation5 + $0x18] sm:$0xff]
        %v348 = vld [vmem:[#allocation5 + $0x20] sm:$0xff]
        %v349 = vld [vmem:[#allocation5 + $0x28] sm:$0xff]
        %v350 = vld [vmem:[#allocation5 + $0x30] sm:$0xff]
        %v351 = vld [vmem:[#allocation5 + $0x38] sm:$0xff]
        %v352 = vld [vmem:[#allocation5 + $0x40] sm:$0xff]
        %v353 = vld [vmem:[#allocation5 + $0x48] sm:$0xff]
        %v354 = vld [vmem:[#allocation5 + $0x50] sm:$0xff]
        %v355 = vld [vmem:[#allocation5 + $0x58] sm:$0xff]
        %v356 = vld [vmem:[#allocation5 + $0x60] sm:$0xff]
        %v357 = vld [vmem:[#allocation5 + $0x68] sm:$0xff]
        %v358 = vld [vmem:[#allocation5 + $0x70] sm:$0xff]
        %v359 = vld [vmem:[#allocation5 + $0x78] sm:$0xff]
        %v360 = vld [vmem:[#allocation5 + $0x80] sm:$0xff]
        %v361 = vld [vmem:[#allocation5 + $0x88] sm:$0xff]
        %v362 = vld [vmem:[#allocation5 + $0x90] sm:$0xff]
        %v363 = vld [vmem:[#allocation5 + $0x98] sm:$0xff]
        %v364 = vld [vmem:[#allocation5 + $0xa0] sm:$0xff]
        %v365 = vld [vmem:[#allocation5 + $0xa8] sm:$0xff]
        %v366 = vld [vmem:[#allocation5 + $0xb0] sm:$0xff]
        %v367 = vld [vmem:[#allocation5 + $0xb8] sm:$0xff]
        %v368 = vld [vmem:[#allocation5 + $0xc0] sm:$0xff]
        %v369 = vld [vmem:[#allocation5 + $0xc8] sm:$0xff]
        %v370 = vld [vmem:[#allocation5 + $0xd0] sm:$0xff]
        %v371 = vld [vmem:[#allocation5 + $0xd8] sm:$0xff]
        %v372 = vld [vmem:[#allocation5 + $0xe0] sm:$0xff]
        %v373 = vld [vmem:[#allocation5 + $0xe8] sm:$0xff]
        %v374 = vld [vmem:[#allocation5 + $0xf0] sm:$0xff]
        %v375 = vld [vmem:[#allocation5 + $0xf8] sm:$0xff]
        %v376 = vld [vmem:[#allocation5 + $0x100] sm:$0xff]
        %v377 = vld [vmem:[#allocation5 + $0x108] sm:$0xff]
        %v378 = vld [vmem:[%s2] sm:$0xf]
        %v380 = vlaneseq
        %v381 = vshrl.u32 %v380, 7
        %v382 = vsub.s32 0, %v381
        %v383 = vrot.slane %v378, %v382
        %v384 = vlaneseq
        %v385 = vshrl.u32 %v384, 7
        %v386 = vsub.s32 1, %v385
        %v387 = vrot.slane %v378, %v386
        %v388 = vlaneseq
        %v389 = vshrl.u32 %v388, 7
        %v390 = vsub.s32 2, %v389
        %v391 = vrot.slane %v378, %v390
        %v392 = vlaneseq
        %v393 = vshrl.u32 %v392, 7
        %v394 = vsub.s32 3, %v393
        %v395 = vrot.slane %v378, %v394
        %v434 = vunpack.c.l.b16 %v344
        %v435 = vunpack.c.h.b16 %v344
        %v436 = vunpack.c.l.b16 %v345
        %v437 = vunpack.c.h.b16 %v345
        %v438 = vunpack.c.l.b16 %v346
        %v439 = vunpack.c.h.b16 %v346
        %v440 = vunpack.c.l.b16 %v347
        %v441 = vunpack.c.h.b16 %v347
        %v442 = vunpack.c.l.b16 %v348
        %v443 = vunpack.c.h.b16 %v348
        %v444 = vunpack.c.l.b16 %v349
        %v445 = vunpack.c.h.b16 %v349
        %v446 = vunpack.c.l.b16 %v350
        %v447 = vunpack.c.h.b16 %v350
        %v448 = vunpack.c.l.b16 %v351
        %v449 = vunpack.c.h.b16 %v351
        %v450 = vunpack.c.l.b16 %v352
        %v451 = vunpack.c.h.b16 %v352
        %v452 = vunpack.c.l.b16 %v353
        %v453 = vunpack.c.h.b16 %v353
        %v454 = vunpack.c.l.b16 %v354
        %v455 = vunpack.c.h.b16 %v354
        %v456 = vunpack.c.l.b16 %v355
        %v457 = vunpack.c.h.b16 %v355
        %v458 = vunpack.c.l.b16 %v356
        %v459 = vunpack.c.h.b16 %v356
        %v460 = vunpack.c.l.b16 %v357
        %v461 = vunpack.c.h.b16 %v357
        %v462 = vunpack.c.l.b16 %v358
        %v463 = vunpack.c.h.b16 %v358
        %v464 = vunpack.c.l.b16 %v359
        %v465 = vunpack.c.h.b16 %v359
        %v466 = vunpack.c.l.b16 %v360
        %v467 = vunpack.c.h.b16 %v360
        %v468 = vunpack.c.l.b16 %v361
        %v469 = vunpack.c.h.b16 %v361
        %v470 = vunpack.c.l.b16 %v362
        %v471 = vunpack.c.h.b16 %v362
        %v472 = vunpack.c.l.b16 %v363
        %v473 = vunpack.c.h.b16 %v363
        %v474 = vunpack.c.l.b16 %v364
        %v475 = vunpack.c.h.b16 %v364
        %v476 = vunpack.c.l.b16 %v365
        %v477 = vunpack.c.h.b16 %v365
        %v478 = vunpack.c.l.b16 %v366
        %v479 = vunpack.c.h.b16 %v366
        %v480 = vunpack.c.l.b16 %v367
        %v481 = vunpack.c.h.b16 %v367
        %v482 = vunpack.c.l.b16 %v368
        %v483 = vunpack.c.h.b16 %v368
        %v484 = vunpack.c.l.b16 %v369
        %v485 = vunpack.c.h.b16 %v369
        %v486 = vunpack.c.l.b16 %v370
        %v487 = vunpack.c.h.b16 %v370
        %v488 = vunpack.c.l.b16 %v371
        %v489 = vunpack.c.h.b16 %v371
        %v490 = vunpack.c.l.b16 %v372
        %v491 = vunpack.c.h.b16 %v372
        %v492 = vunpack.c.l.b16 %v373
        %v493 = vunpack.c.h.b16 %v373
        %v494 = vunpack.c.l.b16 %v374
        %v495 = vunpack.c.h.b16 %v374
        %v496 = vunpack.c.l.b16 %v375
        %v497 = vunpack.c.h.b16 %v375
        %v498 = vunpack.c.l.b16 %v376
        %v499 = vunpack.c.h.b16 %v376
        %v500 = vunpack.c.l.b16 %v377
        %v501 = vunpack.c.h.b16 %v377
        %v502 = vpack.c.b16 %v438, %v434
        %v503 = vpack.c.b16 %v439, %v435
        %v504 = vpack.c.b16 %v440, %v436
        %v505 = vpack.c.b16 %v441, %v437
        %v506 = vpack.c.b16 %v446, %v442
        %v507 = vpack.c.b16 %v447, %v443
        %v508 = vpack.c.b16 %v448, %v444
        %v509 = vpack.c.b16 %v449, %v445
        %v510 = vpack.c.b16 %v454, %v450
        %v511 = vpack.c.b16 %v455, %v451
        %v512 = vpack.c.b16 %v456, %v452
        %v513 = vpack.c.b16 %v457, %v453
        %v514 = vpack.c.b16 %v462, %v458
        %v515 = vpack.c.b16 %v463, %v459
        %v516 = vpack.c.b16 %v464, %v460
        %v517 = vpack.c.b16 %v465, %v461
        %v518 = vpack.c.b16 %v470, %v466
        %v519 = vpack.c.b16 %v471, %v467
        %v520 = vpack.c.b16 %v472, %v468
        %v521 = vpack.c.b16 %v473, %v469
        %v522 = vpack.c.b16 %v478, %v474
        %v523 = vpack.c.b16 %v479, %v475
        %v524 = vpack.c.b16 %v480, %v476
        %v525 = vpack.c.b16 %v481, %v477
        %v526 = vpack.c.b16 %v486, %v482
        %v527 = vpack.c.b16 %v487, %v483
        %v528 = vpack.c.b16 %v488, %v484
        %v529 = vpack.c.b16 %v489, %v485
        %v530 = vpack.c.b16 %v494, %v490
        %v531 = vpack.c.b16 %v495, %v491
        %v532 = vpack.c.b16 %v496, %v492
        %v533 = vpack.c.b16 %v497, %v493
        %v534 = vpack.c.b16 %v498, %v498
        %v535 = vpack.c.b16 %v499, %v499
        %v536 = vpack.c.b16 %v500, %v500
        %v537 = vpack.c.b16 %v501, %v501
        %vm570 = vcmask 64512
        %v572 = vsel %vm570, %v343, 0
        %vm574 = vcmask 1043456
        %v576 = vsel %vm574, %v534, 0
        %v579 = vsel %vm574, %v535, 0
        %v582 = vsel %vm574, %v536, 0
        %v585 = vsel %vm574, %v537, 0
        %587 = vmatprep.subr.bf16.mxu0 %v503
        %588 = vmatpush1.bf16.msra.mxu0 %v502
        %589 = vmatprep.subr.bf16.mxu0 %v507
        %590 = vmatpush1.bf16.msra.mxu0 %v506
        %591 = vmatprep.subr.bf16.mxu0 %v511
        %592 = vmatpush1.bf16.msra.mxu0 %v510
        %593 = vmatprep.subr.bf16.mxu0 %v515
        %594 = vmatpush1.bf16.msra.mxu0 %v514
        %595 = vmatprep.subr.bf16.mxu0 %v519
        %596 = vmatpush1.bf16.msra.mxu0 %v518
        %597 = vmatprep.subr.bf16.mxu0 %v523
        %598 = vmatpush1.bf16.msra.mxu0 %v522
        %599 = vmatprep.subr.bf16.mxu0 %v527
        %600 = vmatpush1.bf16.msra.mxu0 %v526
        %601 = vmatprep.subr.bf16.mxu0 %v531
        %602 = vmatpush1.bf16.msra.mxu0 %v530
        %603 = vmatprep.subr.bf16.mxu0 %v579
        %604 = vmatpush1.bf16.msra.mxu0 %v576
        %605 = vmatprep.subr.bf16.mxu0 0
        %606 = vmatpush1.bf16.msra.mxu0 0
        %607 = vmatprep.subr.bf16.mxu0 0
        %608 = vmatpush1.bf16.msra.mxu0 0
        %609 = vmatprep.subr.bf16.mxu0 0
        %610 = vmatpush1.bf16.msra.mxu0 0
        %611 = vmatprep.subr.bf16.mxu0 0
        %612 = vmatpush1.bf16.msra.mxu0 0
        %613 = vmatprep.subr.bf16.mxu0 0
        %614 = vmatpush1.bf16.msra.mxu0 0
        %615 = vmatprep.subr.bf16.mxu0 0
        %616 = vmatpush1.bf16.msra.mxu0 0
        %617 = vmatprep.subr.bf16.mxu0 0
        %618 = vmatpush1.bf16.msra.mxu0 0
        %619 = vmatprep.mubr.bf16.mxu0 %v572
        %620 = vmatmul.mubr.bf16.gmra.mrb[0].mxu0 %v342
        %v621 = vpop.f32.mrb[0].mxu0
        %v622 = vadd.f32 %v383, %v621
        %v623 = vpop.f32.mrb[0].mxu0
        %v624 = vadd.f32 %v387, %v623
        %v625 = vpop.f32.mrb[0].mxu0
        %v626 = vpop.f32.mrb[0].mxu0
        %627 = vdwg.mxu0
        %628 = vmatprep.subr.bf16.mxu0 %v505
        %629 = vmatpush1.bf16.msra.mxu0 %v504
        %630 = vmatprep.subr.bf16.mxu0 %v509
        %631 = vmatpush1.bf16.msra.mxu0 %v508
        %632 = vmatprep.subr.bf16.mxu0 %v513
        %633 = vmatpush1.bf16.msra.mxu0 %v512
        %634 = vmatprep.subr.bf16.mxu0 %v517
        %635 = vmatpush1.bf16.msra.mxu0 %v516
        %636 = vmatprep.subr.bf16.mxu0 %v521
        %637 = vmatpush1.bf16.msra.mxu0 %v520
        %638 = vmatprep.subr.bf16.mxu0 %v525
        %639 = vmatpush1.bf16.msra.mxu0 %v524
        %640 = vmatprep.subr.bf16.mxu0 %v529
        %641 = vmatpush1.bf16.msra.mxu0 %v528
        %642 = vmatprep.subr.bf16.mxu0 %v533
        %643 = vmatpush1.bf16.msra.mxu0 %v532
        %644 = vmatprep.subr.bf16.mxu0 %v585
        %645 = vmatpush1.bf16.msra.mxu0 %v582
        %646 = vmatprep.subr.bf16.mxu0 0
        %647 = vmatpush1.bf16.msra.mxu0 0
        %648 = vmatprep.subr.bf16.mxu0 0
        %649 = vmatpush1.bf16.msra.mxu0 0
        %650 = vmatprep.subr.bf16.mxu0 0
        %651 = vmatpush1.bf16.msra.mxu0 0
        %652 = vmatprep.subr.bf16.mxu0 0
        %653 = vmatpush1.bf16.msra.mxu0 0
        %654 = vmatprep.subr.bf16.mxu0 0
        %655 = vmatpush1.bf16.msra.mxu0 0
        %656 = vmatprep.subr.bf16.mxu0 0
        %657 = vmatpush1.bf16.msra.mxu0 0
        %658 = vmatprep.subr.bf16.mxu0 0
        %659 = vmatpush1.bf16.msra.mxu0 0
        %660 = vmatprep.mubr.bf16.mxu0 %v572
        %661 = vmatmul.mubr.bf16.gmra.mrb[0].mxu0 %v342
        %v662 = vpop.f32.mrb[0].mxu0
        %v663 = vadd.f32 %v391, %v662
        %v664 = vpop.f32.mrb[0].mxu0
        %v665 = vadd.f32 %v395, %v664
        %v666 = vpop.f32.mrb[0].mxu0
        %v667 = vpop.f32.mrb[0].mxu0
        %668 = vdwg.mxu0
        %v669 = vmul.f32 %v622, 0.01
        %v670 = vmul.f32 %v624, 0.01
        %v671 = vmul.f32 %v663, 0.01
        %v672 = vmul.f32 %v665, 0.01
        %v673 = vmax.f32 %v622, %v669
        %v674 = vmax.f32 %v624, %v670
        %v675 = vmax.f32 %v663, %v671
        %v676 = vmax.f32 %v665, %v672
        %v677 = vpack.c.bf16 %v673, %v673
        %v678 = vpack.c.bf16 %v674, %v674
        %v679 = vpack.c.bf16 %v675, %v675
        %v680 = vpack.c.bf16 %v676, %v676
        %v681 = vld [vmem:[#allocation7] sm:$0xff]
        %v682 = vld [vmem:[#allocation7 + $0x8] sm:$0xff]
        %v683 = vld [vmem:[#allocation7 + $0x10] sm:$0xff]
        %v684 = vld [vmem:[#allocation7 + $0x18] sm:$0xff]
        %v685 = vld [vmem:[#allocation7 + $0x20] sm:$0xff]
        %v686 = vld [vmem:[#allocation7 + $0x28] sm:$0xff]
        %v687 = vld [vmem:[#allocation7 + $0x30] sm:$0xff]
        %v688 = vld [vmem:[#allocation7 + $0x38] sm:$0xff]
        %v689 = vld [vmem:[#allocation7 + $0x40] sm:$0xff]
        %v690 = vld [vmem:[#allocation7 + $0x48] sm:$0xff]
        %v691 = vld [vmem:[#allocation7 + $0x50] sm:$0xff]
        %v692 = vld [vmem:[#allocation7 + $0x58] sm:$0xff]
        %v693 = vld [vmem:[#allocation7 + $0x60] sm:$0xff]
        %v694 = vld [vmem:[#allocation7 + $0x68] sm:$0xff]
        %v695 = vld [vmem:[#allocation7 + $0x70] sm:$0xff]
        %v696 = vld [vmem:[#allocation7 + $0x78] sm:$0xff]
        %v697 = vld [vmem:[#allocation7 + $0x80] sm:$0xff]
        %v698 = vld [vmem:[#allocation7 + $0x88] sm:$0xff]
        %v699 = vld [vmem:[#allocation7 + $0x90] sm:$0xff]
        %v700 = vld [vmem:[#allocation7 + $0x98] sm:$0xff]
        %v701 = vld [vmem:[#allocation7 + $0xa0] sm:$0xff]
        %v702 = vld [vmem:[#allocation7 + $0xa8] sm:$0xff]
        %v703 = vld [vmem:[#allocation7 + $0xb0] sm:$0xff]
        %v704 = vld [vmem:[#allocation7 + $0xb8] sm:$0xff]
        %v705 = vld [vmem:[#allocation7 + $0xc0] sm:$0xff]
        %v706 = vld [vmem:[#allocation7 + $0xc8] sm:$0xff]
        %v707 = vld [vmem:[#allocation7 + $0xd0] sm:$0xff]
        %v708 = vld [vmem:[#allocation7 + $0xd8] sm:$0xff]
        %v709 = vld [vmem:[#allocation7 + $0xe0] sm:$0xff]
        %v710 = vld [vmem:[#allocation7 + $0xe8] sm:$0xff]
        %v711 = vld [vmem:[#allocation7 + $0xf0] sm:$0xff]
        %v712 = vld [vmem:[#allocation7 + $0xf8] sm:$0xff]
        %v713 = vld [vmem:[#allocation7 + $0x100] sm:$0xff]
        %v714 = vld [vmem:[#allocation7 + $0x108] sm:$0xff]
        %v715 = vld [vmem:[#allocation7 + $0x110] sm:$0xff]
        %v716 = vld [vmem:[#allocation7 + $0x118] sm:$0xff]
        %v717 = vld [vmem:[#allocation7 + $0x120] sm:$0xff]
        %v718 = vld [vmem:[#allocation7 + $0x128] sm:$0xff]
        %v719 = vld [vmem:[#allocation7 + $0x130] sm:$0xff]
        %v720 = vld [vmem:[#allocation7 + $0x138] sm:$0xff]
        %v721 = vld [vmem:[#allocation7 + $0x140] sm:$0xff]
        %v722 = vld [vmem:[#allocation7 + $0x148] sm:$0xff]
        %v723 = vld [vmem:[#allocation7 + $0x150] sm:$0xff]
        %v724 = vld [vmem:[#allocation7 + $0x158] sm:$0xff]
        %v725 = vld [vmem:[#allocation7 + $0x160] sm:$0xff]
        %v726 = vld [vmem:[#allocation7 + $0x168] sm:$0xff]
        %v727 = vld [vmem:[#allocation7 + $0x170] sm:$0xff]
        %v728 = vld [vmem:[#allocation7 + $0x178] sm:$0xff]
        %v729 = vld [vmem:[#allocation7 + $0x180] sm:$0xff]
        %v730 = vld [vmem:[#allocation7 + $0x188] sm:$0xff]
        %v731 = vld [vmem:[#allocation7 + $0x190] sm:$0xff]
        %v732 = vld [vmem:[#allocation7 + $0x198] sm:$0xff]
        %v733 = vld [vmem:[#allocation7 + $0x1a0] sm:$0xff]
        %v734 = vld [vmem:[#allocation7 + $0x1a8] sm:$0xff]
        %v735 = vld [vmem:[#allocation7 + $0x1b0] sm:$0xff]
        %v736 = vld [vmem:[#allocation7 + $0x1b8] sm:$0xff]
        %v737 = vld [vmem:[#allocation7 + $0x1c0] sm:$0xff]
        %v738 = vld [vmem:[#allocation7 + $0x1c8] sm:$0xff]
        %v739 = vld [vmem:[#allocation7 + $0x1d0] sm:$0xff]
        %v740 = vld [vmem:[#allocation7 + $0x1d8] sm:$0xff]
        %v741 = vld [vmem:[#allocation7 + $0x1e0] sm:$0xff]
        %v742 = vld [vmem:[#allocation7 + $0x1e8] sm:$0xff]
        %v743 = vld [vmem:[#allocation7 + $0x1f0] sm:$0xff]
        %v744 = vld [vmem:[#allocation7 + $0x1f8] sm:$0xff]
        %v745 = vld [vmem:[#allocation7 + $0x200] sm:$0xff]
        %v746 = vld [vmem:[#allocation7 + $0x208] sm:$0xff]
        %v747 = vld [vmem:[#allocation7 + $0x210] sm:$0xff]
        %v748 = vld [vmem:[#allocation7 + $0x218] sm:$0xff]
        %v749 = vld [vmem:[#allocation7 + $0x220] sm:$0xff]
        %v750 = vld [vmem:[#allocation7 + $0x228] sm:$0xff]
        %v751 = vld [vmem:[#allocation7 + $0x230] sm:$0xff]
        %v752 = vld [vmem:[#allocation7 + $0x238] sm:$0xff]
        %v753 = vld [vmem:[#allocation7 + $0x240] sm:$0xff]
        %v754 = vld [vmem:[#allocation7 + $0x248] sm:$0xff]
        %v755 = vld [vmem:[#allocation7 + $0x250] sm:$0xff]
        %v756 = vld [vmem:[#allocation7 + $0x258] sm:$0xff]
        %v757 = vld [vmem:[#allocation7 + $0x260] sm:$0xff]
        %v758 = vld [vmem:[#allocation7 + $0x268] sm:$0xff]
        %v759 = vld [vmem:[#allocation7 + $0x270] sm:$0xff]
        %v760 = vld [vmem:[#allocation7 + $0x278] sm:$0xff]
        %v761 = vld [vmem:[#allocation7 + $0x280] sm:$0xff]
        %v762 = vld [vmem:[#allocation7 + $0x288] sm:$0xff]
        %v763 = vld [vmem:[#allocation7 + $0x290] sm:$0xff]
        %v764 = vld [vmem:[#allocation7 + $0x298] sm:$0xff]
        %v765 = vld [vmem:[#allocation7 + $0x2a0] sm:$0xff]
        %v766 = vld [vmem:[#allocation7 + $0x2a8] sm:$0xff]
        %v767 = vld [vmem:[#allocation7 + $0x2b0] sm:$0xff]
        %v768 = vld [vmem:[#allocation7 + $0x2b8] sm:$0xff]
        %v769 = vld [vmem:[#allocation7 + $0x2c0] sm:$0xff]
        %v770 = vld [vmem:[#allocation7 + $0x2c8] sm:$0xff]
        %v771 = vld [vmem:[#allocation7 + $0x2d0] sm:$0xff]
        %v772 = vld [vmem:[#allocation7 + $0x2d8] sm:$0xff]
        %v773 = vld [vmem:[#allocation7 + $0x2e0] sm:$0xff]
        %v774 = vld [vmem:[#allocation7 + $0x2e8] sm:$0xff]
        %v775 = vld [vmem:[#allocation7 + $0x2f0] sm:$0xff]
        %v776 = vld [vmem:[#allocation7 + $0x2f8] sm:$0xff]
        %v777 = vld [vmem:[#allocation7 + $0x300] sm:$0xff]
        %v778 = vld [vmem:[#allocation7 + $0x308] sm:$0xff]
        %v779 = vld [vmem:[#allocation7 + $0x310] sm:$0xff]
        %v780 = vld [vmem:[#allocation7 + $0x318] sm:$0xff]
        %v781 = vld [vmem:[#allocation7 + $0x320] sm:$0xff]
        %v782 = vld [vmem:[#allocation7 + $0x328] sm:$0xff]
        %v783 = vld [vmem:[#allocation7 + $0x330] sm:$0xff]
        %v784 = vld [vmem:[#allocation7 + $0x338] sm:$0xff]
        %v785 = vld [vmem:[#allocation7 + $0x340] sm:$0xff]
        %v786 = vld [vmem:[#allocation7 + $0x348] sm:$0xff]
        %v787 = vld [vmem:[#allocation7 + $0x350] sm:$0xff]
        %v788 = vld [vmem:[#allocation7 + $0x358] sm:$0xff]
        %v789 = vld [vmem:[#allocation7 + $0x360] sm:$0xff]
        %v790 = vld [vmem:[#allocation7 + $0x368] sm:$0xff]
        %v791 = vld [vmem:[#allocation7 + $0x370] sm:$0xff]
        %v792 = vld [vmem:[#allocation7 + $0x378] sm:$0xff]
        %v793 = vld [vmem:[#allocation7 + $0x380] sm:$0xff]
        %v794 = vld [vmem:[#allocation7 + $0x388] sm:$0xff]
        %v795 = vld [vmem:[#allocation7 + $0x390] sm:$0xff]
        %v796 = vld [vmem:[#allocation7 + $0x398] sm:$0xff]
        %v797 = vld [vmem:[#allocation7 + $0x3a0] sm:$0xff]
        %v798 = vld [vmem:[#allocation7 + $0x3a8] sm:$0xff]
        %v799 = vld [vmem:[#allocation7 + $0x3b0] sm:$0xff]
        %v800 = vld [vmem:[#allocation7 + $0x3b8] sm:$0xff]
        %v801 = vld [vmem:[#allocation7 + $0x3c0] sm:$0xff]
        %v802 = vld [vmem:[#allocation7 + $0x3c8] sm:$0xff]
        %v803 = vld [vmem:[#allocation7 + $0x3d0] sm:$0xff]
        %v804 = vld [vmem:[#allocation7 + $0x3d8] sm:$0xff]
        %v805 = vld [vmem:[#allocation7 + $0x3e0] sm:$0xff]
        %v806 = vld [vmem:[#allocation7 + $0x3e8] sm:$0xff]
        %v807 = vld [vmem:[#allocation7 + $0x3f0] sm:$0xff]
        %v808 = vld [vmem:[#allocation7 + $0x3f8] sm:$0xff]
        %v809 = vld [vmem:[%s4] sm:$0xf]
        %v811 = vlaneseq
        %v812 = vshrl.u32 %v811, 7
        %v813 = vsub.s32 0, %v812
        %v814 = vrot.slane %v809, %v813
        %v815 = vlaneseq
        %v816 = vshrl.u32 %v815, 7
        %v817 = vsub.s32 1, %v816
        %v818 = vrot.slane %v809, %v817
        %v819 = vlaneseq
        %v820 = vshrl.u32 %v819, 7
        %v821 = vsub.s32 2, %v820
        %v822 = vrot.slane %v809, %v821
        %v823 = vlaneseq
        %v824 = vshrl.u32 %v823, 7
        %v825 = vsub.s32 3, %v824
        %v826 = vrot.slane %v809, %v825
        %v959 = vunpack.c.l.b16 %v681
        %v960 = vunpack.c.h.b16 %v681
        %v961 = vunpack.c.l.b16 %v682
        %v962 = vunpack.c.h.b16 %v682
        %v963 = vunpack.c.l.b16 %v683
        %v964 = vunpack.c.h.b16 %v683
        %v965 = vunpack.c.l.b16 %v684
        %v966 = vunpack.c.h.b16 %v684
        %v967 = vunpack.c.l.b16 %v685
        %v968 = vunpack.c.h.b16 %v685
        %v969 = vunpack.c.l.b16 %v686
        %v970 = vunpack.c.h.b16 %v686
        %v971 = vunpack.c.l.b16 %v687
        %v972 = vunpack.c.h.b16 %v687
        %v973 = vunpack.c.l.b16 %v688
        %v974 = vunpack.c.h.b16 %v688
        %v975 = vunpack.c.l.b16 %v689
        %v976 = vunpack.c.h.b16 %v689
        %v977 = vunpack.c.l.b16 %v690
        %v978 = vunpack.c.h.b16 %v690
        %v979 = vunpack.c.l.b16 %v691
        %v980 = vunpack.c.h.b16 %v691
        %v981 = vunpack.c.l.b16 %v692
        %v982 = vunpack.c.h.b16 %v692
        %v983 = vunpack.c.l.b16 %v693
        %v984 = vunpack.c.h.b16 %v693
        %v985 = vunpack.c.l.b16 %v694
        %v986 = vunpack.c.h.b16 %v694
        %v987 = vunpack.c.l.b16 %v695
        %v988 = vunpack.c.h.b16 %v695
        %v989 = vunpack.c.l.b16 %v696
        %v990 = vunpack.c.h.b16 %v696
        %v991 = vunpack.c.l.b16 %v697
        %v992 = vunpack.c.h.b16 %v697
        %v993 = vunpack.c.l.b16 %v698
        %v994 = vunpack.c.h.b16 %v698
        %v995 = vunpack.c.l.b16 %v699
        %v996 = vunpack.c.h.b16 %v699
        %v997 = vunpack.c.l.b16 %v700
        %v998 = vunpack.c.h.b16 %v700
        %v999 = vunpack.c.l.b16 %v701
        %v1000 = vunpack.c.h.b16 %v701
        %v1001 = vunpack.c.l.b16 %v702
        %v1002 = vunpack.c.h.b16 %v702
        %v1003 = vunpack.c.l.b16 %v703
        %v1004 = vunpack.c.h.b16 %v703
        %v1005 = vunpack.c.l.b16 %v704
        %v1006 = vunpack.c.h.b16 %v704
        %v1007 = vunpack.c.l.b16 %v705
        %v1008 = vunpack.c.h.b16 %v705
        %v1009 = vunpack.c.l.b16 %v706
        %v1010 = vunpack.c.h.b16 %v706
        %v1011 = vunpack.c.l.b16 %v707
        %v1012 = vunpack.c.h.b16 %v707
        %v1013 = vunpack.c.l.b16 %v708
        %v1014 = vunpack.c.h.b16 %v708
        %v1015 = vunpack.c.l.b16 %v709
        %v1016 = vunpack.c.h.b16 %v709
        %v1017 = vunpack.c.l.b16 %v710
        %v1018 = vunpack.c.h.b16 %v710
        %v1019 = vunpack.c.l.b16 %v711
        %v1020 = vunpack.c.h.b16 %v711
        %v1021 = vunpack.c.l.b16 %v712
        %v1022 = vunpack.c.h.b16 %v712
        %v1023 = vunpack.c.l.b16 %v713
        %v1024 = vunpack.c.h.b16 %v713
        %v1025 = vunpack.c.l.b16 %v714
        %v1026 = vunpack.c.h.b16 %v714
        %v1027 = vunpack.c.l.b16 %v715
        %v1028 = vunpack.c.h.b16 %v715
        %v1029 = vunpack.c.l.b16 %v716
        %v1030 = vunpack.c.h.b16 %v716
        %v1031 = vunpack.c.l.b16 %v717
        %v1032 = vunpack.c.h.b16 %v717
        %v1033 = vunpack.c.l.b16 %v718
        %v1034 = vunpack.c.h.b16 %v718
        %v1035 = vunpack.c.l.b16 %v719
        %v1036 = vunpack.c.h.b16 %v719
        %v1037 = vunpack.c.l.b16 %v720
        %v1038 = vunpack.c.h.b16 %v720
        %v1039 = vunpack.c.l.b16 %v721
        %v1040 = vunpack.c.h.b16 %v721
        %v1041 = vunpack.c.l.b16 %v722
        %v1042 = vunpack.c.h.b16 %v722
        %v1043 = vunpack.c.l.b16 %v723
        %v1044 = vunpack.c.h.b16 %v723
        %v1045 = vunpack.c.l.b16 %v724
        %v1046 = vunpack.c.h.b16 %v724
        %v1047 = vunpack.c.l.b16 %v725
        %v1048 = vunpack.c.h.b16 %v725
        %v1049 = vunpack.c.l.b16 %v726
        %v1050 = vunpack.c.h.b16 %v726
        %v1051 = vunpack.c.l.b16 %v727
        %v1052 = vunpack.c.h.b16 %v727
        %v1053 = vunpack.c.l.b16 %v728
        %v1054 = vunpack.c.h.b16 %v728
        %v1055 = vunpack.c.l.b16 %v729
        %v1056 = vunpack.c.h.b16 %v729
        %v1057 = vunpack.c.l.b16 %v730
        %v1058 = vunpack.c.h.b16 %v730
        %v1059 = vunpack.c.l.b16 %v731
        %v1060 = vunpack.c.h.b16 %v731
        %v1061 = vunpack.c.l.b16 %v732
        %v1062 = vunpack.c.h.b16 %v732
        %v1063 = vunpack.c.l.b16 %v733
        %v1064 = vunpack.c.h.b16 %v733
        %v1065 = vunpack.c.l.b16 %v734
        %v1066 = vunpack.c.h.b16 %v734
        %v1067 = vunpack.c.l.b16 %v735
        %v1068 = vunpack.c.h.b16 %v735
        %v1069 = vunpack.c.l.b16 %v736
        %v1070 = vunpack.c.h.b16 %v736
        %v1071 = vunpack.c.l.b16 %v737
        %v1072 = vunpack.c.h.b16 %v737
        %v1073 = vunpack.c.l.b16 %v738
        %v1074 = vunpack.c.h.b16 %v738
        %v1075 = vunpack.c.l.b16 %v739
        %v1076 = vunpack.c.h.b16 %v739
        %v1077 = vunpack.c.l.b16 %v740
        %v1078 = vunpack.c.h.b16 %v740
        %v1079 = vunpack.c.l.b16 %v741
        %v1080 = vunpack.c.h.b16 %v741
        %v1081 = vunpack.c.l.b16 %v742
        %v1082 = vunpack.c.h.b16 %v742
        %v1083 = vunpack.c.l.b16 %v743
        %v1084 = vunpack.c.h.b16 %v743
        %v1085 = vunpack.c.l.b16 %v744
        %v1086 = vunpack.c.h.b16 %v744
        %v1087 = vunpack.c.l.b16 %v745
        %v1088 = vunpack.c.h.b16 %v745
        %v1089 = vunpack.c.l.b16 %v746
        %v1090 = vunpack.c.h.b16 %v746
        %v1091 = vunpack.c.l.b16 %v747
        %v1092 = vunpack.c.h.b16 %v747
        %v1093 = vunpack.c.l.b16 %v748
        %v1094 = vunpack.c.h.b16 %v748
        %v1095 = vunpack.c.l.b16 %v749
        %v1096 = vunpack.c.h.b16 %v749
        %v1097 = vunpack.c.l.b16 %v750
        %v1098 = vunpack.c.h.b16 %v750
        %v1099 = vunpack.c.l.b16 %v751
        %v1100 = vunpack.c.h.b16 %v751
        %v1101 = vunpack.c.l.b16 %v752
        %v1102 = vunpack.c.h.b16 %v752
        %v1103 = vunpack.c.l.b16 %v753
        %v1104 = vunpack.c.h.b16 %v753
        %v1105 = vunpack.c.l.b16 %v754
        %v1106 = vunpack.c.h.b16 %v754
        %v1107 = vunpack.c.l.b16 %v755
        %v1108 = vunpack.c.h.b16 %v755
        %v1109 = vunpack.c.l.b16 %v756
        %v1110 = vunpack.c.h.b16 %v756
        %v1111 = vunpack.c.l.b16 %v757
        %v1112 = vunpack.c.h.b16 %v757
        %v1113 = vunpack.c.l.b16 %v758
        %v1114 = vunpack.c.h.b16 %v758
        %v1115 = vunpack.c.l.b16 %v759
        %v1116 = vunpack.c.h.b16 %v759
        %v1117 = vunpack.c.l.b16 %v760
        %v1118 = vunpack.c.h.b16 %v760
        %v1119 = vunpack.c.l.b16 %v761
        %v1120 = vunpack.c.h.b16 %v761
        %v1121 = vunpack.c.l.b16 %v762
        %v1122 = vunpack.c.h.b16 %v762
        %v1123 = vunpack.c.l.b16 %v763
        %v1124 = vunpack.c.h.b16 %v763
        %v1125 = vunpack.c.l.b16 %v764
        %v1126 = vunpack.c.h.b16 %v764
        %v1127 = vunpack.c.l.b16 %v765
        %v1128 = vunpack.c.h.b16 %v765
        %v1129 = vunpack.c.l.b16 %v766
        %v1130 = vunpack.c.h.b16 %v766
        %v1131 = vunpack.c.l.b16 %v767
        %v1132 = vunpack.c.h.b16 %v767
        %v1133 = vunpack.c.l.b16 %v768
        %v1134 = vunpack.c.h.b16 %v768
        %v1135 = vunpack.c.l.b16 %v769
        %v1136 = vunpack.c.h.b16 %v769
        %v1137 = vunpack.c.l.b16 %v770
        %v1138 = vunpack.c.h.b16 %v770
        %v1139 = vunpack.c.l.b16 %v771
        %v1140 = vunpack.c.h.b16 %v771
        %v1141 = vunpack.c.l.b16 %v772
        %v1142 = vunpack.c.h.b16 %v772
        %v1143 = vunpack.c.l.b16 %v773
        %v1144 = vunpack.c.h.b16 %v773
        %v1145 = vunpack.c.l.b16 %v774
        %v1146 = vunpack.c.h.b16 %v774
        %v1147 = vunpack.c.l.b16 %v775
        %v1148 = vunpack.c.h.b16 %v775
        %v1149 = vunpack.c.l.b16 %v776
        %v1150 = vunpack.c.h.b16 %v776
        %v1151 = vunpack.c.l.b16 %v777
        %v1152 = vunpack.c.h.b16 %v777
        %v1153 = vunpack.c.l.b16 %v778
        %v1154 = vunpack.c.h.b16 %v778
        %v1155 = vunpack.c.l.b16 %v779
        %v1156 = vunpack.c.h.b16 %v779
        %v1157 = vunpack.c.l.b16 %v780
        %v1158 = vunpack.c.h.b16 %v780
        %v1159 = vunpack.c.l.b16 %v781
        %v1160 = vunpack.c.h.b16 %v781
        %v1161 = vunpack.c.l.b16 %v782
        %v1162 = vunpack.c.h.b16 %v782
        %v1163 = vunpack.c.l.b16 %v783
        %v1164 = vunpack.c.h.b16 %v783
        %v1165 = vunpack.c.l.b16 %v784
        %v1166 = vunpack.c.h.b16 %v784
        %v1167 = vunpack.c.l.b16 %v785
        %v1168 = vunpack.c.h.b16 %v785
        %v1169 = vunpack.c.l.b16 %v786
        %v1170 = vunpack.c.h.b16 %v786
        %v1171 = vunpack.c.l.b16 %v787
        %v1172 = vunpack.c.h.b16 %v787
        %v1173 = vunpack.c.l.b16 %v788
        %v1174 = vunpack.c.h.b16 %v788
        %v1175 = vunpack.c.l.b16 %v789
        %v1176 = vunpack.c.h.b16 %v789
        %v1177 = vunpack.c.l.b16 %v790
        %v1178 = vunpack.c.h.b16 %v790
        %v1179 = vunpack.c.l.b16 %v791
        %v1180 = vunpack.c.h.b16 %v791
        %v1181 = vunpack.c.l.b16 %v792
        %v1182 = vunpack.c.h.b16 %v792
        %v1183 = vunpack.c.l.b16 %v793
        %v1184 = vunpack.c.h.b16 %v793
        %v1185 = vunpack.c.l.b16 %v794
        %v1186 = vunpack.c.h.b16 %v794
        %v1187 = vunpack.c.l.b16 %v795
        %v1188 = vunpack.c.h.b16 %v795
        %v1189 = vunpack.c.l.b16 %v796
        %v1190 = vunpack.c.h.b16 %v796
        %v1191 = vunpack.c.l.b16 %v797
        %v1192 = vunpack.c.h.b16 %v797
        %v1193 = vunpack.c.l.b16 %v798
        %v1194 = vunpack.c.h.b16 %v798
        %v1195 = vunpack.c.l.b16 %v799
        %v1196 = vunpack.c.h.b16 %v799
        %v1197 = vunpack.c.l.b16 %v800
        %v1198 = vunpack.c.h.b16 %v800
        %v1199 = vunpack.c.l.b16 %v801
        %v1200 = vunpack.c.h.b16 %v801
        %v1201 = vunpack.c.l.b16 %v802
        %v1202 = vunpack.c.h.b16 %v802
        %v1203 = vunpack.c.l.b16 %v803
        %v1204 = vunpack.c.h.b16 %v803
        %v1205 = vunpack.c.l.b16 %v804
        %v1206 = vunpack.c.h.b16 %v804
        %v1207 = vunpack.c.l.b16 %v805
        %v1208 = vunpack.c.h.b16 %v805
        %v1209 = vunpack.c.l.b16 %v806
        %v1210 = vunpack.c.h.b16 %v806
        %v1211 = vunpack.c.l.b16 %v807
        %v1212 = vunpack.c.h.b16 %v807
        %v1213 = vunpack.c.l.b16 %v808
        %v1214 = vunpack.c.h.b16 %v808
        %v1215 = vpack.c.b16 %v963, %v959
        %v1216 = vpack.c.b16 %v964, %v960
        %v1217 = vpack.c.b16 %v965, %v961
        %v1218 = vpack.c.b16 %v966, %v962
        %v1219 = vpack.c.b16 %v971, %v967
        %v1220 = vpack.c.b16 %v972, %v968
        %v1221 = vpack.c.b16 %v973, %v969
        %v1222 = vpack.c.b16 %v974, %v970
        %v1223 = vpack.c.b16 %v979, %v975
        %v1224 = vpack.c.b16 %v980, %v976
        %v1225 = vpack.c.b16 %v981, %v977
        %v1226 = vpack.c.b16 %v982, %v978
        %v1227 = vpack.c.b16 %v987, %v983
        %v1228 = vpack.c.b16 %v988, %v984
        %v1229 = vpack.c.b16 %v989, %v985
        %v1230 = vpack.c.b16 %v990, %v986
        %v1231 = vpack.c.b16 %v995, %v991
        %v1232 = vpack.c.b16 %v996, %v992
        %v1233 = vpack.c.b16 %v997, %v993
        %v1234 = vpack.c.b16 %v998, %v994
        %v1235 = vpack.c.b16 %v1003, %v999
        %v1236 = vpack.c.b16 %v1004, %v1000
        %v1237 = vpack.c.b16 %v1005, %v1001
        %v1238 = vpack.c.b16 %v1006, %v1002
        %v1239 = vpack.c.b16 %v1011, %v1007
        %v1240 = vpack.c.b16 %v1012, %v1008
        %v1241 = vpack.c.b16 %v1013, %v1009
        %v1242 = vpack.c.b16 %v1014, %v1010
        %v1243 = vpack.c.b16 %v1019, %v1015
        %v1244 = vpack.c.b16 %v1020, %v1016
        %v1245 = vpack.c.b16 %v1021, %v1017
        %v1246 = vpack.c.b16 %v1022, %v1018
        %v1247 = vpack.c.b16 %v1027, %v1023
        %v1248 = vpack.c.b16 %v1028, %v1024
        %v1249 = vpack.c.b16 %v1029, %v1025
        %v1250 = vpack.c.b16 %v1030, %v1026
        %v1251 = vpack.c.b16 %v1035, %v1031
        %v1252 = vpack.c.b16 %v1036, %v1032
        %v1253 = vpack.c.b16 %v1037, %v1033
        %v1254 = vpack.c.b16 %v1038, %v1034
        %v1255 = vpack.c.b16 %v1043, %v1039
        %v1256 = vpack.c.b16 %v1044, %v1040
        %v1257 = vpack.c.b16 %v1045, %v1041
        %v1258 = vpack.c.b16 %v1046, %v1042
        %v1259 = vpack.c.b16 %v1051, %v1047
        %v1260 = vpack.c.b16 %v1052, %v1048
        %v1261 = vpack.c.b16 %v1053, %v1049
        %v1262 = vpack.c.b16 %v1054, %v1050
        %v1263 = vpack.c.b16 %v1059, %v1055
        %v1264 = vpack.c.b16 %v1060, %v1056
        %v1265 = vpack.c.b16 %v1061, %v1057
        %v1266 = vpack.c.b16 %v1062, %v1058
        %v1267 = vpack.c.b16 %v1067, %v1063
        %v1268 = vpack.c.b16 %v1068, %v1064
        %v1269 = vpack.c.b16 %v1069, %v1065
        %v1270 = vpack.c.b16 %v1070, %v1066
        %v1271 = vpack.c.b16 %v1075, %v1071
        %v1272 = vpack.c.b16 %v1076, %v1072
        %v1273 = vpack.c.b16 %v1077, %v1073
        %v1274 = vpack.c.b16 %v1078, %v1074
        %v1275 = vpack.c.b16 %v1083, %v1079
        %v1276 = vpack.c.b16 %v1084, %v1080
        %v1277 = vpack.c.b16 %v1085, %v1081
        %v1278 = vpack.c.b16 %v1086, %v1082
        %v1279 = vpack.c.b16 %v1091, %v1087
        %v1280 = vpack.c.b16 %v1092, %v1088
        %v1281 = vpack.c.b16 %v1093, %v1089
        %v1282 = vpack.c.b16 %v1094, %v1090
        %v1283 = vpack.c.b16 %v1099, %v1095
        %v1284 = vpack.c.b16 %v1100, %v1096
        %v1285 = vpack.c.b16 %v1101, %v1097
        %v1286 = vpack.c.b16 %v1102, %v1098
        %v1287 = vpack.c.b16 %v1107, %v1103
        %v1288 = vpack.c.b16 %v1108, %v1104
        %v1289 = vpack.c.b16 %v1109, %v1105
        %v1290 = vpack.c.b16 %v1110, %v1106
        %v1291 = vpack.c.b16 %v1115, %v1111
        %v1292 = vpack.c.b16 %v1116, %v1112
        %v1293 = vpack.c.b16 %v1117, %v1113
        %v1294 = vpack.c.b16 %v1118, %v1114
        %v1295 = vpack.c.b16 %v1123, %v1119
        %v1296 = vpack.c.b16 %v1124, %v1120
        %v1297 = vpack.c.b16 %v1125, %v1121
        %v1298 = vpack.c.b16 %v1126, %v1122
        %v1299 = vpack.c.b16 %v1131, %v1127
        %v1300 = vpack.c.b16 %v1132, %v1128
        %v1301 = vpack.c.b16 %v1133, %v1129
        %v1302 = vpack.c.b16 %v1134, %v1130
        %v1303 = vpack.c.b16 %v1139, %v1135
        %v1304 = vpack.c.b16 %v1140, %v1136
        %v1305 = vpack.c.b16 %v1141, %v1137
        %v1306 = vpack.c.b16 %v1142, %v1138
        %v1307 = vpack.c.b16 %v1147, %v1143
        %v1308 = vpack.c.b16 %v1148, %v1144
        %v1309 = vpack.c.b16 %v1149, %v1145
        %v1310 = vpack.c.b16 %v1150, %v1146
        %v1311 = vpack.c.b16 %v1155, %v1151
        %v1312 = vpack.c.b16 %v1156, %v1152
        %v1313 = vpack.c.b16 %v1157, %v1153
        %v1314 = vpack.c.b16 %v1158, %v1154
        %v1315 = vpack.c.b16 %v1163, %v1159
        %v1316 = vpack.c.b16 %v1164, %v1160
        %v1317 = vpack.c.b16 %v1165, %v1161
        %v1318 = vpack.c.b16 %v1166, %v1162
        %v1319 = vpack.c.b16 %v1171, %v1167
        %v1320 = vpack.c.b16 %v1172, %v1168
        %v1321 = vpack.c.b16 %v1173, %v1169
        %v1322 = vpack.c.b16 %v1174, %v1170
        %v1323 = vpack.c.b16 %v1179, %v1175
        %v1324 = vpack.c.b16 %v1180, %v1176
        %v1325 = vpack.c.b16 %v1181, %v1177
        %v1326 = vpack.c.b16 %v1182, %v1178
        %v1327 = vpack.c.b16 %v1187, %v1183
        %v1328 = vpack.c.b16 %v1188, %v1184
        %v1329 = vpack.c.b16 %v1189, %v1185
        %v1330 = vpack.c.b16 %v1190, %v1186
        %v1331 = vpack.c.b16 %v1195, %v1191
        %v1332 = vpack.c.b16 %v1196, %v1192
        %v1333 = vpack.c.b16 %v1197, %v1193
        %v1334 = vpack.c.b16 %v1198, %v1194
        %v1335 = vpack.c.b16 %v1203, %v1199
        %v1336 = vpack.c.b16 %v1204, %v1200
        %v1337 = vpack.c.b16 %v1205, %v1201
        %v1338 = vpack.c.b16 %v1206, %v1202
        %v1339 = vpack.c.b16 %v1211, %v1207
        %v1340 = vpack.c.b16 %v1212, %v1208
        %v1341 = vpack.c.b16 %v1213, %v1209
        %v1342 = vpack.c.b16 %v1214, %v1210
        %1471 = vmatprep.subr.bf16.mxu0 %v1216
        %1472 = vmatpush1.bf16.msra.mxu0 %v1215
        %1473 = vmatprep.subr.bf16.mxu0 %v1220
        %1474 = vmatpush1.bf16.msra.mxu0 %v1219
        %1475 = vmatprep.subr.bf16.mxu0 %v1224
        %1476 = vmatpush1.bf16.msra.mxu0 %v1223
        %1477 = vmatprep.subr.bf16.mxu0 %v1228
        %1478 = vmatpush1.bf16.msra.mxu0 %v1227
        %1479 = vmatprep.subr.bf16.mxu0 %v1232
        %1480 = vmatpush1.bf16.msra.mxu0 %v1231
        %1481 = vmatprep.subr.bf16.mxu0 %v1236
        %1482 = vmatpush1.bf16.msra.mxu0 %v1235
        %1483 = vmatprep.subr.bf16.mxu0 %v1240
        %1484 = vmatpush1.bf16.msra.mxu0 %v1239
        %1485 = vmatprep.subr.bf16.mxu0 %v1244
        %1486 = vmatpush1.bf16.msra.mxu0 %v1243
        %1487 = vmatprep.subr.bf16.mxu0 %v1248
        %1488 = vmatpush1.bf16.msra.mxu0 %v1247
        %1489 = vmatprep.subr.bf16.mxu0 %v1252
        %1490 = vmatpush1.bf16.msra.mxu0 %v1251
        %1491 = vmatprep.subr.bf16.mxu0 %v1256
        %1492 = vmatpush1.bf16.msra.mxu0 %v1255
        %1493 = vmatprep.subr.bf16.mxu0 %v1260
        %1494 = vmatpush1.bf16.msra.mxu0 %v1259
        %1495 = vmatprep.subr.bf16.mxu0 %v1264
        %1496 = vmatpush1.bf16.msra.mxu0 %v1263
        %1497 = vmatprep.subr.bf16.mxu0 %v1268
        %1498 = vmatpush1.bf16.msra.mxu0 %v1267
        %1499 = vmatprep.subr.bf16.mxu0 %v1272
        %1500 = vmatpush1.bf16.msra.mxu0 %v1271
        %1501 = vmatprep.subr.bf16.mxu0 %v1276
        %1502 = vmatpush1.bf16.msra.mxu0 %v1275
        %1503 = vmatprep.mubr.bf16.mxu0 %v678
        %1504 = vmatmul.mubr.bf16.gmra.mrb[0].mxu0 %v677
        %v1505 = vpop.f32.mrb[0].mxu0
        %v1506 = vadd.f32 %v814, %v1505
        %v1507 = vpop.f32.mrb[0].mxu0
        %v1508 = vadd.f32 %v818, %v1507
        %v1509 = vpop.f32.mrb[0].mxu0
        %v1510 = vpop.f32.mrb[0].mxu0
        %1511 = vdwg.mxu0
        %1512 = vmatprep.subr.bf16.mxu0 %v1280
        %1513 = vmatpush1.bf16.msra.mxu0 %v1279
        %1514 = vmatprep.subr.bf16.mxu0 %v1284
        %1515 = vmatpush1.bf16.msra.mxu0 %v1283
        %1516 = vmatprep.subr.bf16.mxu0 %v1288
        %1517 = vmatpush1.bf16.msra.mxu0 %v1287
        %1518 = vmatprep.subr.bf16.mxu0 %v1292
        %1519 = vmatpush1.bf16.msra.mxu0 %v1291
        %1520 = vmatprep.subr.bf16.mxu0 %v1296
        %1521 = vmatpush1.bf16.msra.mxu0 %v1295
        %1522 = vmatprep.subr.bf16.mxu0 %v1300
        %1523 = vmatpush1.bf16.msra.mxu0 %v1299
        %1524 = vmatprep.subr.bf16.mxu0 %v1304
        %1525 = vmatpush1.bf16.msra.mxu0 %v1303
        %1526 = vmatprep.subr.bf16.mxu0 %v1308
        %1527 = vmatpush1.bf16.msra.mxu0 %v1307
        %1528 = vmatprep.subr.bf16.mxu0 %v1312
        %1529 = vmatpush1.bf16.msra.mxu0 %v1311
        %1530 = vmatprep.subr.bf16.mxu0 %v1316
        %1531 = vmatpush1.bf16.msra.mxu0 %v1315
        %1532 = vmatprep.subr.bf16.mxu0 %v1320
        %1533 = vmatpush1.bf16.msra.mxu0 %v1319
        %1534 = vmatprep.subr.bf16.mxu0 %v1324
        %1535 = vmatpush1.bf16.msra.mxu0 %v1323
        %1536 = vmatprep.subr.bf16.mxu0 %v1328
        %1537 = vmatpush1.bf16.msra.mxu0 %v1327
        %1538 = vmatprep.subr.bf16.mxu0 %v1332
        %1539 = vmatpush1.bf16.msra.mxu0 %v1331
        %1540 = vmatprep.subr.bf16.mxu0 %v1336
        %1541 = vmatpush1.bf16.msra.mxu0 %v1335
        %1542 = vmatprep.subr.bf16.mxu0 %v1340
        %1543 = vmatpush1.bf16.msra.mxu0 %v1339
        %1544 = vmatprep.mubr.bf16.mxu0 %v680
        %1545 = vmatmul.mubr.bf16.gmra.mrb[0].mxu0 %v679
        %v1546 = vpop.f32.mrb[0].mxu0
        %v1547 = vadd.f32 %v1506, %v1546
        %v1548 = vpop.f32.mrb[0].mxu0
        %v1549 = vadd.f32 %v1508, %v1548
        %v1550 = vpop.f32.mrb[0].mxu0
        %v1551 = vpop.f32.mrb[0].mxu0
        %1552 = vdwg.mxu0
        %1553 = vmatprep.subr.bf16.mxu0 %v1218
        %1554 = vmatpush1.bf16.msra.mxu0 %v1217
        %1555 = vmatprep.subr.bf16.mxu0 %v1222
        %1556 = vmatpush1.bf16.msra.mxu0 %v1221
        %1557 = vmatprep.subr.bf16.mxu0 %v1226
        %1558 = vmatpush1.bf16.msra.mxu0 %v1225
        %1559 = vmatprep.subr.bf16.mxu0 %v1230
        %1560 = vmatpush1.bf16.msra.mxu0 %v1229
        %1561 = vmatprep.subr.bf16.mxu0 %v1234
        %1562 = vmatpush1.bf16.msra.mxu0 %v1233
        %1563 = vmatprep.subr.bf16.mxu0 %v1238
        %1564 = vmatpush1.bf16.msra.mxu0 %v1237
        %1565 = vmatprep.subr.bf16.mxu0 %v1242
        %1566 = vmatpush1.bf16.msra.mxu0 %v1241
        %1567 = vmatprep.subr.bf16.mxu0 %v1246
        %1568 = vmatpush1.bf16.msra.mxu0 %v1245
        %1569 = vmatprep.subr.bf16.mxu0 %v1250
        %1570 = vmatpush1.bf16.msra.mxu0 %v1249
        %1571 = vmatprep.subr.bf16.mxu0 %v1254
        %1572 = vmatpush1.bf16.msra.mxu0 %v1253
        %1573 = vmatprep.subr.bf16.mxu0 %v1258
        %1574 = vmatpush1.bf16.msra.mxu0 %v1257
        %1575 = vmatprep.subr.bf16.mxu0 %v1262
        %1576 = vmatpush1.bf16.msra.mxu0 %v1261
        %1577 = vmatprep.subr.bf16.mxu0 %v1266
        %1578 = vmatpush1.bf16.msra.mxu0 %v1265
        %1579 = vmatprep.subr.bf16.mxu0 %v1270
        %1580 = vmatpush1.bf16.msra.mxu0 %v1269
        %1581 = vmatprep.subr.bf16.mxu0 %v1274
        %1582 = vmatpush1.bf16.msra.mxu0 %v1273
        %1583 = vmatprep.subr.bf16.mxu0 %v1278
        %1584 = vmatpush1.bf16.msra.mxu0 %v1277
        %1585 = vmatprep.mubr.bf16.mxu0 %v678
        %1586 = vmatmul.mubr.bf16.gmra.mrb[0].mxu0 %v677
        %v1587 = vpop.f32.mrb[0].mxu0
        %v1588 = vadd.f32 %v822, %v1587
        %v1589 = vpop.f32.mrb[0].mxu0
        %v1590 = vadd.f32 %v826, %v1589
        %v1591 = vpop.f32.mrb[0].mxu0
        %v1592 = vpop.f32.mrb[0].mxu0
        %1593 = vdwg.mxu0
        %1594 = vmatprep.subr.bf16.mxu0 %v1282
        %1595 = vmatpush1.bf16.msra.mxu0 %v1281
        %1596 = vmatprep.subr.bf16.mxu0 %v1286
        %1597 = vmatpush1.bf16.msra.mxu0 %v1285
        %1598 = vmatprep.subr.bf16.mxu0 %v1290
        %1599 = vmatpush1.bf16.msra.mxu0 %v1289
        %1600 = vmatprep.subr.bf16.mxu0 %v1294
        %1601 = vmatpush1.bf16.msra.mxu0 %v1293
        %1602 = vmatprep.subr.bf16.mxu0 %v1298
        %1603 = vmatpush1.bf16.msra.mxu0 %v1297
        %1604 = vmatprep.subr.bf16.mxu0 %v1302
        %1605 = vmatpush1.bf16.msra.mxu0 %v1301
        %1606 = vmatprep.subr.bf16.mxu0 %v1306
        %1607 = vmatpush1.bf16.msra.mxu0 %v1305
        %1608 = vmatprep.subr.bf16.mxu0 %v1310
        %1609 = vmatpush1.bf16.msra.mxu0 %v1309
        %1610 = vmatprep.subr.bf16.mxu0 %v1314
        %1611 = vmatpush1.bf16.msra.mxu0 %v1313
        %1612 = vmatprep.subr.bf16.mxu0 %v1318
        %1613 = vmatpush1.bf16.msra.mxu0 %v1317
        %1614 = vmatprep.subr.bf16.mxu0 %v1322
        %1615 = vmatpush1.bf16.msra.mxu0 %v1321
        %1616 = vmatprep.subr.bf16.mxu0 %v1326
        %1617 = vmatpush1.bf16.msra.mxu0 %v1325
        %1618 = vmatprep.subr.bf16.mxu0 %v1330
        %1619 = vmatpush1.bf16.msra.mxu0 %v1329
        %1620 = vmatprep.subr.bf16.mxu0 %v1334
        %1621 = vmatpush1.bf16.msra.mxu0 %v1333
        %1622 = vmatprep.subr.bf16.mxu0 %v1338
        %1623 = vmatpush1.bf16.msra.mxu0 %v1337
        %1624 = vmatprep.subr.bf16.mxu0 %v1342
        %1625 = vmatpush1.bf16.msra.mxu0 %v1341
        %1626 = vmatprep.mubr.bf16.mxu0 %v680
        %1627 = vmatmul.mubr.bf16.gmra.mrb[0].mxu0 %v679
        %v1628 = vpop.f32.mrb[0].mxu0
        %v1629 = vadd.f32 %v1588, %v1628
        %v1630 = vpop.f32.mrb[0].mxu0
        %v1631 = vadd.f32 %v1590, %v1630
        %v1632 = vpop.f32.mrb[0].mxu0
        %v1633 = vpop.f32.mrb[0].mxu0
        %1634 = vdwg.mxu0
        %v1635 = vmul.f32 %v1547, 0.01
        %v1636 = vmul.f32 %v1549, 0.01
        %v1637 = vmul.f32 %v1629, 0.01
        %v1638 = vmul.f32 %v1631, 0.01
        %v1639 = vmax.f32 %v1547, %v1635
        %v1640 = vmax.f32 %v1549, %v1636
        %v1641 = vmax.f32 %v1629, %v1637
        %v1642 = vmax.f32 %v1631, %v1638
        %v1643 = vpack.c.bf16 %v1639, %v1639
        %v1644 = vpack.c.bf16 %v1640, %v1640
        %v1645 = vpack.c.bf16 %v1641, %v1641
        %v1646 = vpack.c.bf16 %v1642, %v1642
        %v1647 = vld [vmem:[#allocation8] sm:$0xf]
        %v1648 = vld [vmem:[#allocation8 + $0x4] sm:$0xf]
        %v1649 = vld [vmem:[#allocation8 + $0x8] sm:$0xf]
        %v1650 = vld [vmem:[#allocation8 + $0xc] sm:$0xf]
        %v1651 = vld [vmem:[#allocation8 + $0x10] sm:$0xf]
        %v1652 = vld [vmem:[#allocation8 + $0x14] sm:$0xf]
        %v1653 = vld [vmem:[#allocation8 + $0x18] sm:$0xf]
        %v1654 = vld [vmem:[#allocation8 + $0x1c] sm:$0xf]
        %v1655 = vld [vmem:[#allocation8 + $0x20] sm:$0xf]
        %v1656 = vld [vmem:[#allocation8 + $0x24] sm:$0xf]
        %v1657 = vld [vmem:[#allocation8 + $0x28] sm:$0xf]
        %v1658 = vld [vmem:[#allocation8 + $0x2c] sm:$0xf]
        %v1659 = vld [vmem:[#allocation8 + $0x30] sm:$0xf]
        %v1660 = vld [vmem:[#allocation8 + $0x34] sm:$0xf]
        %v1661 = vld [vmem:[#allocation8 + $0x38] sm:$0xf]
        %v1662 = vld [vmem:[#allocation8 + $0x3c] sm:$0xf]
        %v1663 = vld [vmem:[#allocation8 + $0x40] sm:$0xf]
        %v1664 = vld [vmem:[#allocation8 + $0x44] sm:$0xf]
        %v1665 = vld [vmem:[#allocation8 + $0x48] sm:$0xf]
        %v1666 = vld [vmem:[#allocation8 + $0x4c] sm:$0xf]
        %v1667 = vld [vmem:[#allocation8 + $0x50] sm:$0xf]
        %v1668 = vld [vmem:[#allocation8 + $0x54] sm:$0xf]
        %v1669 = vld [vmem:[#allocation8 + $0x58] sm:$0xf]
        %v1670 = vld [vmem:[#allocation8 + $0x5c] sm:$0xf]
        %v1671 = vld [vmem:[#allocation8 + $0x60] sm:$0xf]
        %v1672 = vld [vmem:[#allocation8 + $0x64] sm:$0xf]
        %v1673 = vld [vmem:[#allocation8 + $0x68] sm:$0xf]
        %v1674 = vld [vmem:[#allocation8 + $0x6c] sm:$0xf]
        %v1675 = vld [vmem:[#allocation8 + $0x70] sm:$0xf]
        %v1676 = vld [vmem:[#allocation8 + $0x74] sm:$0xf]
        %v1677 = vld [vmem:[#allocation8 + $0x78] sm:$0xf]
        %v1678 = vld [vmem:[#allocation8 + $0x7c] sm:$0xf]
        %v1679 = vld [vmem:[#allocation8 + $0x80] sm:$0xf]
        %v1680 = vld [vmem:[#allocation8 + $0x84] sm:$0xf]
        %v1681 = vld [vmem:[#allocation8 + $0x88] sm:$0xf]
        %v1682 = vld [vmem:[#allocation8 + $0x8c] sm:$0xf]
        %v1683 = vld [vmem:[#allocation8 + $0x90] sm:$0xf]
        %v1684 = vld [vmem:[#allocation8 + $0x94] sm:$0xf]
        %v1685 = vld [vmem:[#allocation8 + $0x98] sm:$0xf]
        %v1686 = vld [vmem:[#allocation8 + $0x9c] sm:$0xf]
        %v1687 = vld [vmem:[#allocation8 + $0xa0] sm:$0xf]
        %v1688 = vld [vmem:[#allocation8 + $0xa4] sm:$0xf]
        %v1689 = vld [vmem:[#allocation8 + $0xa8] sm:$0xf]
        %v1690 = vld [vmem:[#allocation8 + $0xac] sm:$0xf]
        %v1691 = vld [vmem:[#allocation8 + $0xb0] sm:$0xf]
        %v1692 = vld [vmem:[#allocation8 + $0xb4] sm:$0xf]
        %v1693 = vld [vmem:[#allocation8 + $0xb8] sm:$0xf]
        %v1694 = vld [vmem:[#allocation8 + $0xbc] sm:$0xf]
        %v1695 = vld [vmem:[#allocation8 + $0xc0] sm:$0xf]
        %v1696 = vld [vmem:[#allocation8 + $0xc4] sm:$0xf]
        %v1697 = vld [vmem:[#allocation8 + $0xc8] sm:$0xf]
        %v1698 = vld [vmem:[#allocation8 + $0xcc] sm:$0xf]
        %v1699 = vld [vmem:[#allocation8 + $0xd0] sm:$0xf]
        %v1700 = vld [vmem:[#allocation8 + $0xd4] sm:$0xf]
        %v1701 = vld [vmem:[#allocation8 + $0xd8] sm:$0xf]
        %v1702 = vld [vmem:[#allocation8 + $0xdc] sm:$0xf]
        %v1703 = vld [vmem:[#allocation8 + $0xe0] sm:$0xf]
        %v1704 = vld [vmem:[#allocation8 + $0xe4] sm:$0xf]
        %v1705 = vld [vmem:[#allocation8 + $0xe8] sm:$0xf]
        %v1706 = vld [vmem:[#allocation8 + $0xec] sm:$0xf]
        %v1707 = vld [vmem:[#allocation8 + $0xf0] sm:$0xf]
        %v1708 = vld [vmem:[#allocation8 + $0xf4] sm:$0xf]
        %v1709 = vld [vmem:[#allocation8 + $0xf8] sm:$0xf]
        %v1710 = vld [vmem:[#allocation8 + $0xfc] sm:$0xf]
        %v1711 = vld [vmem:[%s6] sm:$0x1]
        %v1713 = vlaneseq
        %v1714 = vshrl.u32 %v1713, 7
        %v1715 = vsub.s32 0, %v1714
        %v1716 = vrot.slane %v1711, %v1715
        %v1782 = vunpack.c.l.b16 %v1647
        %v1783 = vunpack.c.l.b16 %v1648
        %v1784 = vunpack.c.l.b16 %v1649
        %v1785 = vunpack.c.l.b16 %v1650
        %v1786 = vunpack.c.l.b16 %v1651
        %v1787 = vunpack.c.l.b16 %v1652
        %v1788 = vunpack.c.l.b16 %v1653
        %v1789 = vunpack.c.l.b16 %v1654
        %v1790 = vunpack.c.l.b16 %v1655
        %v1791 = vunpack.c.l.b16 %v1656
        %v1792 = vunpack.c.l.b16 %v1657
        %v1793 = vunpack.c.l.b16 %v1658
        %v1794 = vunpack.c.l.b16 %v1659
        %v1795 = vunpack.c.l.b16 %v1660
        %v1796 = vunpack.c.l.b16 %v1661
        %v1797 = vunpack.c.l.b16 %v1662
        %v1798 = vunpack.c.l.b16 %v1663
        %v1799 = vunpack.c.l.b16 %v1664
        %v1800 = vunpack.c.l.b16 %v1665
        %v1801 = vunpack.c.l.b16 %v1666
        %v1802 = vunpack.c.l.b16 %v1667
        %v1803 = vunpack.c.l.b16 %v1668
        %v1804 = vunpack.c.l.b16 %v1669
        %v1805 = vunpack.c.l.b16 %v1670
        %v1806 = vunpack.c.l.b16 %v1671
        %v1807 = vunpack.c.l.b16 %v1672
        %v1808 = vunpack.c.l.b16 %v1673
        %v1809 = vunpack.c.l.b16 %v1674
        %v1810 = vunpack.c.l.b16 %v1675
        %v1811 = vunpack.c.l.b16 %v1676
        %v1812 = vunpack.c.l.b16 %v1677
        %v1813 = vunpack.c.l.b16 %v1678
        %v1814 = vunpack.c.l.b16 %v1679
        %v1815 = vunpack.c.l.b16 %v1680
        %v1816 = vunpack.c.l.b16 %v1681
        %v1817 = vunpack.c.l.b16 %v1682
        %v1818 = vunpack.c.l.b16 %v1683
        %v1819 = vunpack.c.l.b16 %v1684
        %v1820 = vunpack.c.l.b16 %v1685
        %v1821 = vunpack.c.l.b16 %v1686
        %v1822 = vunpack.c.l.b16 %v1687
        %v1823 = vunpack.c.l.b16 %v1688
        %v1824 = vunpack.c.l.b16 %v1689
        %v1825 = vunpack.c.l.b16 %v1690
        %v1826 = vunpack.c.l.b16 %v1691
        %v1827 = vunpack.c.l.b16 %v1692
        %v1828 = vunpack.c.l.b16 %v1693
        %v1829 = vunpack.c.l.b16 %v1694
        %v1830 = vunpack.c.l.b16 %v1695
        %v1831 = vunpack.c.l.b16 %v1696
        %v1832 = vunpack.c.l.b16 %v1697
        %v1833 = vunpack.c.l.b16 %v1698
        %v1834 = vunpack.c.l.b16 %v1699
        %v1835 = vunpack.c.l.b16 %v1700
        %v1836 = vunpack.c.l.b16 %v1701
        %v1837 = vunpack.c.l.b16 %v1702
        %v1838 = vunpack.c.l.b16 %v1703
        %v1839 = vunpack.c.l.b16 %v1704
        %v1840 = vunpack.c.l.b16 %v1705
        %v1841 = vunpack.c.l.b16 %v1706
        %v1842 = vunpack.c.l.b16 %v1707
        %v1843 = vunpack.c.l.b16 %v1708
        %v1844 = vunpack.c.l.b16 %v1709
        %v1845 = vunpack.c.l.b16 %v1710
        %v1846 = vpack.c.b16 %v1783, %v1782
        %v1847 = vpack.c.b16 %v1785, %v1784
        %v1848 = vpack.c.b16 %v1787, %v1786
        %v1849 = vpack.c.b16 %v1789, %v1788
        %v1850 = vpack.c.b16 %v1791, %v1790
        %v1851 = vpack.c.b16 %v1793, %v1792
        %v1852 = vpack.c.b16 %v1795, %v1794
        %v1853 = vpack.c.b16 %v1797, %v1796
        %v1854 = vpack.c.b16 %v1799, %v1798
        %v1855 = vpack.c.b16 %v1801, %v1800
        %v1856 = vpack.c.b16 %v1803, %v1802
        %v1857 = vpack.c.b16 %v1805, %v1804
        %v1858 = vpack.c.b16 %v1807, %v1806
        %v1859 = vpack.c.b16 %v1809, %v1808
        %v1860 = vpack.c.b16 %v1811, %v1810
        %v1861 = vpack.c.b16 %v1813, %v1812
        %v1862 = vpack.c.b16 %v1815, %v1814
        %v1863 = vpack.c.b16 %v1817, %v1816
        %v1864 = vpack.c.b16 %v1819, %v1818
        %v1865 = vpack.c.b16 %v1821, %v1820
        %v1866 = vpack.c.b16 %v1823, %v1822
        %v1867 = vpack.c.b16 %v1825, %v1824
        %v1868 = vpack.c.b16 %v1827, %v1826
        %v1869 = vpack.c.b16 %v1829, %v1828
        %v1870 = vpack.c.b16 %v1831, %v1830
        %v1871 = vpack.c.b16 %v1833, %v1832
        %v1872 = vpack.c.b16 %v1835, %v1834
        %v1873 = vpack.c.b16 %v1837, %v1836
        %v1874 = vpack.c.b16 %v1839, %v1838
        %v1875 = vpack.c.b16 %v1841, %v1840
        %v1876 = vpack.c.b16 %v1843, %v1842
        %v1877 = vpack.c.b16 %v1845, %v1844
        %1910 = vmatprep.subr.bf16.mxu0 0
        %1911 = vmatpush1.bf16.msra.mxu0 %v1846
        %1912 = vmatprep.subr.bf16.mxu0 0
        %1913 = vmatpush1.bf16.msra.mxu0 %v1847
        %1914 = vmatprep.subr.bf16.mxu0 0
        %1915 = vmatpush1.bf16.msra.mxu0 %v1848
        %1916 = vmatprep.subr.bf16.mxu0 0
        %1917 = vmatpush1.bf16.msra.mxu0 %v1849
        %1918 = vmatprep.subr.bf16.mxu0 0
        %1919 = vmatpush1.bf16.msra.mxu0 %v1850
        %1920 = vmatprep.subr.bf16.mxu0 0
        %1921 = vmatpush1.bf16.msra.mxu0 %v1851
        %1922 = vmatprep.subr.bf16.mxu0 0
        %1923 = vmatpush1.bf16.msra.mxu0 %v1852
        %1924 = vmatprep.subr.bf16.mxu0 0
        %1925 = vmatpush1.bf16.msra.mxu0 %v1853
        %1926 = vmatprep.subr.bf16.mxu0 0
        %1927 = vmatpush1.bf16.msra.mxu0 %v1854
        %1928 = vmatprep.subr.bf16.mxu0 0
        %1929 = vmatpush1.bf16.msra.mxu0 %v1855
        %1930 = vmatprep.subr.bf16.mxu0 0
        %1931 = vmatpush1.bf16.msra.mxu0 %v1856
        %1932 = vmatprep.subr.bf16.mxu0 0
        %1933 = vmatpush1.bf16.msra.mxu0 %v1857
        %1934 = vmatprep.subr.bf16.mxu0 0
        %1935 = vmatpush1.bf16.msra.mxu0 %v1858
        %1936 = vmatprep.subr.bf16.mxu0 0
        %1937 = vmatpush1.bf16.msra.mxu0 %v1859
        %1938 = vmatprep.subr.bf16.mxu0 0
        %1939 = vmatpush1.bf16.msra.mxu0 %v1860
        %1940 = vmatprep.subr.bf16.mxu0 0
        %1941 = vmatpush1.bf16.msra.mxu0 %v1861
        %1942 = vmatprep.mubr.bf16.mxu0 %v1644
        %1943 = vmatmul.mubr.bf16.gmra.mrb[0].mxu0 %v1643
        %v1944 = vpop.f32.mrb[0].mxu0
        %v1945 = vadd.f32 %v1716, %v1944
        %v1946 = vpop.f32.mrb[0].mxu0
        %v1947 = vpop.f32.mrb[0].mxu0
        %v1948 = vpop.f32.mrb[0].mxu0
        %1949 = vdwg.mxu0
        %1950 = vmatprep.subr.bf16.mxu0 0
        %1951 = vmatpush1.bf16.msra.mxu0 %v1862
        %1952 = vmatprep.subr.bf16.mxu0 0
        %1953 = vmatpush1.bf16.msra.mxu0 %v1863
        %1954 = vmatprep.subr.bf16.mxu0 0
        %1955 = vmatpush1.bf16.msra.mxu0 %v1864
        %1956 = vmatprep.subr.bf16.mxu0 0
        %1957 = vmatpush1.bf16.msra.mxu0 %v1865
        %1958 = vmatprep.subr.bf16.mxu0 0
        %1959 = vmatpush1.bf16.msra.mxu0 %v1866
        %1960 = vmatprep.subr.bf16.mxu0 0
        %1961 = vmatpush1.bf16.msra.mxu0 %v1867
        %1962 = vmatprep.subr.bf16.mxu0 0
        %1963 = vmatpush1.bf16.msra.mxu0 %v1868
        %1964 = vmatprep.subr.bf16.mxu0 0
        %1965 = vmatpush1.bf16.msra.mxu0 %v1869
        %1966 = vmatprep.subr.bf16.mxu0 0
        %1967 = vmatpush1.bf16.msra.mxu0 %v1870
        %1968 = vmatprep.subr.bf16.mxu0 0
        %1969 = vmatpush1.bf16.msra.mxu0 %v1871
        %1970 = vmatprep.subr.bf16.mxu0 0
        %1971 = vmatpush1.bf16.msra.mxu0 %v1872
        %1972 = vmatprep.subr.bf16.mxu0 0
        %1973 = vmatpush1.bf16.msra.mxu0 %v1873
        %1974 = vmatprep.subr.bf16.mxu0 0
        %1975 = vmatpush1.bf16.msra.mxu0 %v1874
        %1976 = vmatprep.subr.bf16.mxu0 0
        %1977 = vmatpush1.bf16.msra.mxu0 %v1875
        %1978 = vmatprep.subr.bf16.mxu0 0
        %1979 = vmatpush1.bf16.msra.mxu0 %v1876
        %1980 = vmatprep.subr.bf16.mxu0 0
        %1981 = vmatpush1.bf16.msra.mxu0 %v1877
        %1982 = vmatprep.mubr.bf16.mxu0 %v1646
        %1983 = vmatmul.mubr.bf16.gmra.mrb[0].mxu0 %v1645
        %v1984 = vpop.f32.mrb[0].mxu0
        %v1985 = vadd.f32 %v1945, %v1984
        %v1986 = vpop.f32.mrb[0].mxu0
        %v1987 = vpop.f32.mrb[0].mxu0
        %v1988 = vpop.f32.mrb[0].mxu0
        %1989 = vdwg.mxu0
        %1990 = vst [vmem:[%s338] sm:$0xff] %v1985
        %s1991 = sand.u32 %s186, 1
        %s1992 = scalar_lea.sflag [#allocation4], %s1991
        %s1993 = sand.u32 %s186, 1
        %s1994 = smul.addr %s1993, 8
        %s1995 = scalar_lea.vmem [#allocation10], %s1994
        // Predicated region
        $region65: #{_encoder_pallas.1} parent=47 // pred_check
          %p1996 = pneg %p196
        $region66: #{_encoder_pallas.1} parent=47 // pred_check_branch
          %1998 = sbr.rel (%p1996) target = $region68
        $region67: #{_encoder_pallas.1} parent=47 // pred_region
          %s2000 = ssub.s32 128, 128
          %2001 = vsyncadd %s1992, %s2000
          %s2002 = smul.addr %s26, 128
          %s2003 = scalar_lea.hbm %s7, %s2002
          %s2005 = sshll.u32 %s1995, 4
          %s2006 = int_to_ptr.vmem [resolvable:$true] %s2005
          %2008 = dma.vmem_to_hbm [thread:$0]  %s2006, 128, %s2003, %s1992
        $region68: #{_encoder_pallas.1} parent=47 // pred_fallthru
          _
      $region48: #{_encoder_pallas.1} parent=5 // pred_fallthru
        _
      %p2009 = scmp.le.s32.totalorder 2, %s21
      // Predicated region
      $region69: #{_encoder_pallas.1} parent=5 // pred_check
        %p2010 = pneg %p2009
      $region70: #{_encoder_pallas.1} parent=5 // pred_check_branch
        %2012 = sbr.rel (%p2010) target = $region72
      $region71: #{_encoder_pallas.1} parent=5 // pred_region
        %s2013 = ssub.s32 %s21, 2
        // Predicated region
        $region73: #{_encoder_pallas.1} parent=71 // pred_check
          %p2014 = pneg %p202
        $region74: #{_encoder_pallas.1} parent=71 // pred_check_branch
          %2016 = sbr.rel (%p2014) target = $region76
        $region75: #{_encoder_pallas.1} parent=71 // pred_region
          %s2017 = sand.u32 %s187, 1
          %s2018 = scalar_lea.sflag [#allocation4], %s2017
          %s2019 = sand.u32 %s187, 1
          %s2020 = smul.addr %s2019, 8
          %s2021 = scalar_lea.vmem [#allocation10], %s2020
          %2022 = dma.done %s2018, 128
        $region76: #{_encoder_pallas.1} parent=71 // pred_fallthru
          _
      $region72: #{_encoder_pallas.1} parent=5 // pred_fallthru
        _
    $region6: #{_encoder_pallas.1} parent=1 // loop_footer
      %s25 = sadd.s32 1, %s21
    $region7: #{_encoder_pallas.1} parent=1 // loop_footer_branch
      %20 = sbr.rel target = $region3
    $region8: #{_encoder_pallas.1} parent=1 // loop_exit
      _
    %2023 = vsyncpa [#allocation3], 1
    %s2024 = scalar_lea.sflag [#allocation3], 1
    %2025 = vsyncpa %s2024, 1
    %2026 = vsyncpa [#allocation6], 1
    %2027 = vsyncpa [#allocation9], 1
    %2028 = vsyncpa [#allocation4], 1
    %s2029 = scalar_lea.sflag [#allocation4], 1
    %2030 = vsyncpa %s2029, 1

</llo_original>
